<compile_context>
chip_gen: v5e
topology: v5e:2x2
jax: 0.10.0
libtpu: 0.0.40
codegen_flags: <defaults>
</compile_context>

<pallas_src>
import functools

import jax
import jax.numpy as jnp
from jax import lax
from jax.experimental import pallas as pl
from jax.experimental.pallas import tpu as pltpu

BN_EPS = 1e-5


def _round_up(n, m):
    return ((n + m - 1) // m) * m


# -----------------------------------------------------------------------------
# Fused Pallas kernel: one grid step == (batch element, output-row tile)
# -----------------------------------------------------------------------------
def _inverted_residual_kernel(xs_ref, w1_ref, b1_ref, wdw_ref, b2_ref,
                              w3_ref, b3_ref, out_ref, *, stride, TH, Wo,
                              Rslab, Cslab, H, W, has_residual):
    """Fused 1x1 expand -> BN -> ReLU6 -> 3x3 depthwise(stride) -> BN -> ReLU6
    -> 1x1 project -> BN -> optional residual, for one (batch, row-tile) step.

    xs_ref  : (1, 1, Rslab*Cslab, Cin) bf16 input slab (spatial pad + halo;
              stride 2: 4 stride-parity blocks stacked along rows).
    w1_ref  : (Cin, Hid)   bf16, 1x1 expansion weight with BN1 scale folded.
    b1_ref  : (1, Hid)     f32, folded BN1 shift.
    wdw_ref : (9, Hid)     f32, depthwise 3x3 taps with BN2 scale folded.
    b2_ref  : (1, Hid)     f32, folded BN2 shift.
    w3_ref  : (Hid, CoutP) bf16, 1x1 projection with BN3 scale folded,
              output channels zero-padded to a multiple of 128 (lane-dense).
    b3_ref  : (1, CoutP)   f32, folded BN3 shift (zero in the padding).
    out_ref : (1, 1, TH*Wo, CoutP) bf16.
    """
    t = pl.program_id(1)                     # output-row tile index
    cin = xs_ref.shape[-1]
    hid = w1_ref.shape[-1]
    coutp = w3_ref.shape[-1]

    # ---- 1x1 expansion (+ folded BN1) + ReLU6 over the whole slab (MXU) -----
    xs = xs_ref[0, 0]                                          # (Rslab*Cslab, Cin)
    y1 = jnp.dot(xs, w1_ref[...], preferred_element_type=jnp.float32)
    y1 = jnp.clip(y1 + b1_ref[...], 0.0, 6.0)
    y1 = y1.reshape(Rslab, Cslab, hid)

    # ---- in-kernel conv-padding / alignment mask (iota -> no HBM stream) ----
    if stride == 1:
        r = lax.broadcasted_iota(jnp.int32, (Rslab, Cslab), 0) + t * TH
        c = lax.broadcasted_iota(jnp.int32, (Rslab, Cslab), 1)
        valid = ((r >= 1) & (r <= H) & (c >= 1) & (c <= W)).astype(jnp.float32)
    else:
        Rpar = TH + 1
        rr = lax.broadcasted_iota(jnp.int32, (Rpar, Cslab), 0) + t * TH
        cc = lax.broadcasted_iota(jnp.int32, (Rpar, Cslab), 1)
        parts = []
        for pr in (0, 1):
            for pc in (0, 1):
                gr, gc = 2 * rr + pr, 2 * cc + pc
                parts.append(((gr >= 1) & (gr <= H) &
                              (gc >= 1) & (gc <= W)).astype(jnp.float32))
        valid = jnp.concatenate(parts, axis=0)                 # (Rslab, Cslab)
    y1 = y1 * valid[:, :, None]                                # zero conv padding

    wdw = wdw_ref[...]                                         # load once (9, Hid)
    b2 = b2_ref[...]
    w3 = w3_ref[...]
    b3 = b3_ref[...]
    if has_residual:
        xs3 = xs.reshape(Rslab, Cslab, cin)
        # Route the Cin residual channels into the first Cin of CoutP lanes via
        # a tiny 0/1 matmul (MXU) -- avoids an unaligned lane concat and the old
        # channel-amplified xres HBM stream.
        eye = (lax.broadcasted_iota(jnp.int32, (cin, coutp), 0) ==
               lax.broadcasted_iota(jnp.int32, (cin, coutp), 1)).astype(jnp.bfloat16)

    # ---- 3x3 depthwise (+BN2+ReLU6) and 1x1 projection (+BN3) in 8-row ------
    #      strips: the 9-tap partial sum stays register-resident.
    # TODO(synk): for very wide images also strip over columns / use bf16 MACs
    # on v6e/v7x (kept f32 here so one code path also suits v5e's VPU).
    STRIP = 8
    for r0 in range(0, TH, STRIP):
        rows = min(STRIP, TH - r0)
        acc = None
        for kh in range(3):
            for kw in range(3):
                if stride == 1:
                    xtap = y1[r0 + kh:r0 + kh + rows, kw:kw + Wo, :]
                else:  # stride 2: parity-stacked layout -> contiguous slices
                    rr0 = ((kh % 2) * 2 + (kw % 2)) * (TH + 1) + r0 + kh // 2
                    xtap = y1[rr0:rr0 + rows, kw // 2:kw // 2 + Wo, :]
                term = xtap * wdw[kh * 3 + kw]
                acc = term if acc is None else acc + term      # no zeros-init pass
        y2 = jnp.clip(acc + b2, 0.0, 6.0).reshape(rows * Wo, hid)

        z = jnp.dot(y2.astype(jnp.bfloat16), w3,
                    preferred_element_type=jnp.float32) + b3
        if has_residual:
            xres = xs3[1 + r0:1 + r0 + rows, 1:1 + Wo, :].reshape(rows * Wo, cin)
            z = z + jnp.dot(xres, eye, preferred_element_type=jnp.float32)
        out_ref[0, 0, r0 * Wo:(r0 + rows) * Wo, :] = z.astype(out_ref.dtype)


# -----------------------------------------------------------------------------
# Wrapper / pallas_call plumbing
# -----------------------------------------------------------------------------
def _choose_tile_rows(Ho, Wo, hid, coutp, stride):
    """Output-row tile: keep matmul M (TH*Wo) >= ~256 rows, but bound the
    per-step VMEM working set (v7x has only 64 MiB physical VMEM)."""
    budget = 24 * 2 ** 20
    th = max(8, pl.cdiv(256, Wo))
    th = _round_up(th, 8)

    def per_step_bytes(th_):
        if stride == 1:
            rslab, cslab = th_ + 2, _round_up(Wo + 2, 8)
        else:
            rslab, cslab = 4 * (th_ + 1), _round_up(Wo + 1, 8)
        rpix = rslab * cslab
        return (2 * rpix * 128 * 2            # input slab (lane-padded bf16, 2 bufs)
                + 2 * th_ * Wo * coutp * 2    # bf16 output (2 bufs)
                + rpix * hid * 4              # y1
                + 2 * th_ * Wo * hid * 4      # acc / y2
                + th_ * Wo * coutp * 4)       # z
    while th > 8 and per_step_bytes(th) > budget:
        th -= 8
    return min(th, Ho)


def _build_slabs(x, stride, TH, nT):
    """Per-tile bf16 input slabs with a duplicated 1-row halo.
    Returns (B, nT, Rslab*Cslab, Cin), Rslab, Cslab."""
    B, H, W, cin = x.shape
    xp = jnp.pad(x, ((0, 0), (1, 1), (1, 1), (0, 0)))          # spatial pad 1
    if stride == 1:
        Rslab = TH + 2
        Cslab = _round_up(W + 2, 8)                            # sublane-aligned width
        xp = jnp.pad(xp, ((0, 0), (0, nT * TH + 2 - (H + 2)),
                          (0, Cslab - (W + 2)), (0, 0)))
        slabs = jnp.stack([xp[:, t * TH: t * TH + Rslab] for t in range(nT)],
                          axis=1)                              # (B,nT,Rslab,Cslab,Cin)
    else:
        Ho, Wo = H // 2, W // 2
        Rpar = TH + 1
        Cslab = _round_up(Wo + 1, 8)
        # stride-2 parity decomposition (ee, eo, oe, oo), each (B, Ho+1, Wo+1, C)
        phases = [xp[:, pr::2, pc::2] for pr in (0, 1) for pc in (0, 1)]
        need = nT * TH + 1
        phases = [jnp.pad(p, ((0, 0), (0, need - p.shape[1]),
                              (0, Cslab - p.shape[2]), (0, 0))) for p in phases]
        tiles = [jnp.concatenate([p[:, t * TH: t * TH + Rpar] for p in phases],
                                 axis=1) for t in range(nT)]
        slabs = jnp.stack(tiles, axis=1)                       # (B,nT,4*Rpar,Cslab,Cin)
        Rslab = 4 * Rpar
    slabs = slabs.astype(jnp.bfloat16).reshape(slabs.shape[0], nT,
                                               Rslab * Cslab, cin)
    return slabs, Rslab, Cslab


def _run_block(xslab, w1, b1, wdw, b2, w3, b3, *, stride, TH, Wo, Rslab, Cslab,
               H, W, has_residual):
    B, nT, Rpix, cin = xslab.shape
    coutp = w3.shape[1]
    npix = TH * Wo

    kern = functools.partial(_inverted_residual_kernel, stride=stride, TH=TH,
                             Wo=Wo, Rslab=Rslab, Cslab=Cslab, H=H, W=W,
                             has_residual=has_residual)

    def cspec(a):  # whole (small) parameter array, constant across the grid
        nd = a.ndim
        return pl.BlockSpec(a.shape, lambda b, t, nd=nd: (0,) * nd)

    return pl.pallas_call(
        kern,
        out_shape=jax.ShapeDtypeStruct((B, nT, npix, coutp), jnp.bfloat16),
        grid=(B, nT),
        in_specs=[pl.BlockSpec((1, 1, Rpix, cin), lambda b, t: (b, t, 0, 0)),
                  cspec(w1), cspec(b1), cspec(wdw), cspec(b2),
                  cspec(w3), cspec(b3)],
        out_specs=pl.BlockSpec((1, 1, npix, coutp), lambda b, t: (b, t, 0, 0)),
        compiler_params=pltpu.CompilerParams(
            # batch and row-tile axes are both independent -> megacore sharding
            dimension_semantics=("parallel", "parallel"),
            # explicit scoped-VMEM budget: above the 16/32 MiB defaults on
            # v5e/v6e, safely inside v7x's 64 MiB physical VMEM; the tile-row
            # chooser keeps the per-step working set well under this.
            vmem_limit_bytes=48 * 1024 * 1024),
    )(xslab, w1, b1, wdw, b2, w3, b3)


@functools.partial(jax.jit,
                   static_argnames=("out_ch", "stride", "use_residual", "tile_rows"))
def inverted_residual_forward(x_nchw, kp, *, out_ch, stride, use_residual,
                              tile_rows=None):
    """Full InvertedResidual forward.  Input/output NCHW (f32) like PyTorch.
    TODO(synk): for a chain of blocks, keep activations bf16 NHWC (channel
    padded) end-to-end instead of transposing/slicing back per block."""
    assert stride in (1, 2)
    x = jnp.transpose(x_nchw, (0, 2, 3, 1)).astype(jnp.bfloat16)   # NHWC, bf16 I/O
    B, H, W, cin = x.shape
    if stride == 2:
        assert H % 2 == 0 and W % 2 == 0, "stride-2 path needs even H, W"
    Ho, Wo = (H, W) if stride == 1 else (H // 2, W // 2)

    hid = kp['w1'].shape[1]
    coutp = kp['w3'].shape[1]
    TH = tile_rows if tile_rows is not None else _choose_tile_rows(
        Ho, Wo, hid, coutp, stride)
    TH = min(TH, Ho)
    nT = pl.cdiv(Ho, TH)

    xslab, Rslab, Cslab = _build_slabs(x, stride, TH, nT)

    out = _run_block(xslab, kp['w1'], kp['b1'], kp['wdw'], kp['b2'],
                     kp['w3'], kp['b3'], stride=stride, TH=TH, Wo=Wo,
                     Rslab=Rslab, Cslab=Cslab, H=H, W=W,
                     has_residual=use_residual)                 # (B,nT,TH*Wo,coutp)
    out = out.reshape(B, nT * TH, Wo, coutp)[:, :Ho, :, :out_ch]
    return jnp.transpose(out, (0, 3, 1, 2)).astype(jnp.float32)    # NCHW f32


# -----------------------------------------------------------------------------
# Parameter construction (PyTorch layouts) + kernel-layout / BN-fold conversion
# -----------------------------------------------------------------------------
def init_params(key, in_ch, out_ch, expansion):
    hid = in_ch * expansion
    ks = jax.random.split(key, 15)
    nrm = lambda k, shape, s: jax.random.normal(k, shape, jnp.float32) * s
    uni = lambda k, shape: jax.random.uniform(k, shape, jnp.float32, 0.5, 1.5)
    return {
        'w1': nrm(ks[0], (hid, in_ch, 1, 1), 0.2),        # Conv2d 1x1, bias=False
        'bn1_g': uni(ks[1], (hid,)), 'bn1_b': nrm(ks[2], (hid,), 0.1),
        'bn1_m': nrm(ks[3], (hid,), 0.1), 'bn1_v': uni(ks[4], (hid,)),
        'wdw': nrm(ks[5], (hid, 1, 3, 3), 0.3),           # depthwise 3x3, bias=False
        'bn2_g': uni(ks[6], (hid,)), 'bn2_b': nrm(ks[7], (hid,), 0.1),
        'bn2_m': nrm(ks[8], (hid,), 0.1), 'bn2_v': uni(ks[9], (hid,)),
        'w3': nrm(ks[10], (out_ch, hid, 1, 1), 0.1),      # Conv2d 1x1, bias=False
        'bn3_g': uni(ks[11], (out_ch,)), 'bn3_b': nrm(ks[12], (out_ch,), 0.1),
        'bn3_m': nrm(ks[13], (out_ch,), 0.1), 'bn3_v': uni(ks[14], (out_ch,)),
    }


def to_kernel_params(p):
    # NOTE: BN scale is folded into the bf16 weights; if running variances can
    # be pathologically small, keep the per-channel scale in f32 post-matmul.
    def fold(g, b, m, v):
        s = g / jnp.sqrt(v + BN_EPS)
        return s, b - m * s

    s1, sh1 = fold(p['bn1_g'], p['bn1_b'], p['bn1_m'], p['bn1_v'])
    s2, sh2 = fold(p['bn2_g'], p['bn2_b'], p['bn2_m'], p['bn2_v'])
    s3, sh3 = fold(p['bn3_g'], p['bn3_b'], p['bn3_m'], p['bn3_v'])
    hid = p['w1'].shape[0]
    out_ch = p['w3'].shape[0]
    coutp = _round_up(out_ch, 128)                        # lane-dense output width

    kp = {}
    kp['w1'] = (p['w1'][:, :, 0, 0].T * s1[None, :]).astype(jnp.bfloat16)  # (Cin, Hid)
    kp['b1'] = sh1[None, :]
    kp['wdw'] = (jnp.transpose(p['wdw'][:, 0], (1, 2, 0)).reshape(9, hid)
                 * s2[None, :])                                            # (9, Hid)
    kp['b2'] = sh2[None, :]
    w3 = p['w3'][:, :, 0, 0].T * s3[None, :]                               # (Hid, Cout)
    kp['w3'] = jnp.pad(w3, ((0, 0), (0, coutp - out_ch))).astype(jnp.bfloat16)
    kp['b3'] = jnp.pad(sh3, (0, coutp - out_ch))[None, :]
    return kp


# -----------------------------------------------------------------------------
# Pure-JAX reference (mirrors the PyTorch forward, eval-mode BN, f32 HIGHEST)
# -----------------------------------------------------------------------------
def reference_forward(x, p, *, stride, use_residual, hidden):
    HI = lax.Precision.HIGHEST

    def conv(x, w, s, pad, groups=1):
        return lax.conv_general_dilated(
            x, w, (s, s), [(pad, pad), (pad, pad)],
            dimension_numbers=('NCHW', 'OIHW', 'NCHW'),
            feature_group_count=groups, precision=HI)

    def bn(x, g, b, m, v):
        sc = g / jnp.sqrt(v + BN_EPS)
        return (x - m[None, :, None, None]) * sc[None, :, None, None] \
            + b[None, :, None, None]

    relu6 = lambda t: jnp.clip(t, 0.0, 6.0)

    y = relu6(bn(conv(x, p['w1'], 1, 0),
                 p['bn1_g'], p['bn1_b'], p['bn1_m'], p['bn1_v']))
    y = relu6(bn(conv(y, p['wdw'], stride, 1, groups=hidden),
                 p['bn2_g'], p['bn2_b'], p['bn2_m'], p['bn2_v']))
    y = bn(conv(y, p['w3'], 1, 0),
           p['bn3_g'], p['bn3_b'], p['bn3_m'], p['bn3_v'])
    return x + y if use_residual else y


# -----------------------------------------------------------------------------
if __name__ == "__main__":
    key = jax.random.PRNGKey(0)
    kA, kB, kx = jax.random.split(key, 3)

    B, H, W = 2, 16, 16
    IN_CH, EXP = 16, 8                                   # hidden = 128 (lane-dense)
    x = jax.random.normal(kx, (B, IN_CH, H, W), jnp.float32)   # NCHW like PyTorch

    # Tolerance sized for bf16 MXU matmuls / bf16 I/O vs. an f32 HIGHEST reference.
    TOL = dict(rtol=2e-2, atol=5e-2)

    # --- Config A: stride=1, in == out channels -> residual; 2 spatial tiles --
    out_ch_a, stride_a = IN_CH, 1
    use_res_a = (stride_a == 1 and IN_CH == out_ch_a)
    pA = init_params(kA, IN_CH, out_ch_a, EXP)
    outA = inverted_residual_forward(x, to_kernel_params(pA), out_ch=out_ch_a,
                                     stride=stride_a, use_residual=use_res_a,
                                     tile_rows=8)
    outA = jax.block_until_ready(outA)
    refA = reference_forward(x, pA, stride=stride_a, use_residual=use_res_a,
                             hidden=IN_CH * EXP)
    assert outA.shape == (B, out_ch_a, H, W), outA.shape
    assert jnp.allclose(outA, refA, **TOL), float(jnp.max(jnp.abs(outA - refA)))

    # --- Config B: stride=2, in != out channels -> no residual ---------------
    out_ch_b, stride_b = 24, 2
    use_res_b = (stride_b == 1 and IN_CH == out_ch_b)
    pB = init_params(kB, IN_CH, out_ch_b, EXP)
    outB = inverted_residual_forward(x, to_kernel_params(pB), out_ch=out_ch_b,
                                     stride=stride_b, use_residual=use_res_b)
    outB = jax.block_until_ready(outB)
    refB = reference_forward(x, pB, stride=stride_b, use_residual=use_res_b,
                             hidden=IN_CH * EXP)
    assert outB.shape == (B, out_ch_b, H // 2, W // 2), outB.shape
    assert jnp.allclose(outB, refB, **TOL), float(jnp.max(jnp.abs(outB - refB)))

    print("KERNEL_OK")
</pallas_src>

<mosaic_0001>
module attributes {stable_mosaic.version = 11 : i64} {
  func.func @_inverted_residual_kernel(%arg0: i32, %arg1: i32, %arg2: memref<1x1x240x16xbf16, #tpu.memory_space<vmem>>, %arg3: memref<16x128xbf16, #tpu.memory_space<vmem>>, %arg4: memref<1x128xf32, #tpu.memory_space<vmem>>, %arg5: memref<9x128xf32, #tpu.memory_space<vmem>>, %arg6: memref<1x128xf32, #tpu.memory_space<vmem>>, %arg7: memref<128x128xbf16, #tpu.memory_space<vmem>>, %arg8: memref<1x128xf32, #tpu.memory_space<vmem>>, %arg9: memref<1x1x128x128xbf16, #tpu.memory_space<vmem>>) attributes {dimension_semantics = [#tpu.dimension_semantics<parallel>, #tpu.dimension_semantics<parallel>], iteration_bounds = array<i64: 2, 2>, scalar_prefetch = 0 : i64, scratch_operands = 0 : i64, tpu.core_type = #tpu.core_type<tc>, window_params = [{transform_indices = @transform_0, window_bounds = array<i64: 1, 1, 240, 16>}, {pipeline_mode = #tpu.pipeline_mode<synchronous>, transform_indices = @transform_1, window_bounds = array<i64: 16, 128>}, {pipeline_mode = #tpu.pipeline_mode<synchronous>, transform_indices = @transform_2, window_bounds = array<i64: 1, 128>}, {pipeline_mode = #tpu.pipeline_mode<synchronous>, transform_indices = @transform_3, window_bounds = array<i64: 9, 128>}, {pipeline_mode = #tpu.pipeline_mode<synchronous>, transform_indices = @transform_4, window_bounds = array<i64: 1, 128>}, {pipeline_mode = #tpu.pipeline_mode<synchronous>, transform_indices = @transform_5, window_bounds = array<i64: 128, 128>}, {pipeline_mode = #tpu.pipeline_mode<synchronous>, transform_indices = @transform_6, window_bounds = array<i64: 1, 128>}, {transform_indices = @transform_7, window_bounds = array<i64: 1, 1, 128, 128>}]} {
    %c0 = arith.constant 0 : index
    %c0_0 = arith.constant 0 : index
    %c0_1 = arith.constant 0 : index
    %c0_2 = arith.constant 0 : index
    %0 = vector.load %arg2[%c0, %c0_0, %c0_1, %c0_2] : memref<1x1x240x16xbf16, #tpu.memory_space<vmem>>, vector<1x1x240x16xbf16>
    %1 = vector.shape_cast %0 : vector<1x1x240x16xbf16> to vector<240x16xbf16>
    %c0_3 = arith.constant 0 : index
    %c0_4 = arith.constant 0 : index
    %2 = vector.load %arg3[%c0_3, %c0_4] : memref<16x128xbf16, #tpu.memory_space<vmem>>, vector<16x128xbf16>
    %cst = arith.constant dense<0.000000e+00> : vector<240x128xf32>
    %3 = tpu.matmul %1, %2, %cst {dimension_numbers = #tpu.dot_dimension_numbers<[1], [0], [0], [1], [0, 0, 1, 1], [], []>} : vector<240x16xbf16>, vector<16x128xbf16>, vector<240x128xf32> -> vector<240x128xf32>
    %c0_5 = arith.constant 0 : index
    %c0_6 = arith.constant 0 : index
    %4 = vector.load %arg4[%c0_5, %c0_6] : memref<1x128xf32, #tpu.memory_space<vmem>>, vector<1x128xf32>
    %5 = vector.broadcast %4 : vector<1x128xf32> to vector<240x128xf32>
    %6 = arith.addf %3, %5 : vector<240x128xf32>
    %cst_7 = arith.constant 0.000000e+00 : f32
    %cst_8 = arith.constant 6.000000e+00 : f32
    %7 = vector.broadcast %cst_7 : f32 to vector<240x128xf32>
    %8 = arith.maximumf %7, %6 : vector<240x128xf32>
    %9 = vector.broadcast %cst_8 : f32 to vector<240x128xf32>
    %10 = arith.minimumf %9, %8 : vector<240x128xf32>
    %11 = vector.shape_cast %10 : vector<240x128xf32> to vector<10x24x128xf32>
    %12 = tpu.iota {dimensions = array<i32: 0>} : vector<10x24xi32>
    %c8_i32 = arith.constant 8 : i32
    %13 = arith.muli %arg1, %c8_i32 : i32
    %14 = vector.broadcast %13 : i32 to vector<10x24xi32>
    %15 = arith.addi %12, %14 : vector<10x24xi32>
    %16 = tpu.iota {dimensions = array<i32: 1>} : vector<10x24xi32>
    %c1_i32 = arith.constant 1 : i32
    %17 = vector.broadcast %c1_i32 : i32 to vector<10x24xi32>
    %18 = arith.cmpi sge, %15, %17 : vector<10x24xi32>
    %c16_i32 = arith.constant 16 : i32
    %19 = vector.broadcast %c16_i32 : i32 to vector<10x24xi32>
    %20 = arith.cmpi sle, %15, %19 : vector<10x24xi32>
    %21 = arith.andi %18, %20 : vector<10x24xi1>
    %c1_i32_9 = arith.constant 1 : i32
    %22 = vector.broadcast %c1_i32_9 : i32 to vector<10x24xi32>
    %23 = arith.cmpi sge, %16, %22 : vector<10x24xi32>
    %24 = arith.andi %21, %23 : vector<10x24xi1>
    %c16_i32_10 = arith.constant 16 : i32
    %25 = vector.broadcast %c16_i32_10 : i32 to vector<10x24xi32>
    %26 = arith.cmpi sle, %16, %25 : vector<10x24xi32>
    %27 = arith.andi %24, %26 : vector<10x24xi1>
    %28 = arith.extui %27 : vector<10x24xi1> to vector<10x24xi32>
    %29 = arith.sitofp %28 : vector<10x24xi32> to vector<10x24xf32>
    %30 = vector.shape_cast %29 : vector<10x24xf32> to vector<10x24x1xf32>
    %31 = vector.broadcast %30 : vector<10x24x1xf32> to vector<10x24x128xf32>
    %32 = arith.mulf %11, %31 : vector<10x24x128xf32>
    %c0_11 = arith.constant 0 : index
    %c0_12 = arith.constant 0 : index
    %33 = vector.load %arg5[%c0_11, %c0_12] : memref<9x128xf32, #tpu.memory_space<vmem>>, vector<9x128xf32>
    %c0_13 = arith.constant 0 : index
    %c0_14 = arith.constant 0 : index
    %34 = vector.load %arg6[%c0_13, %c0_14] : memref<1x128xf32, #tpu.memory_space<vmem>>, vector<1x128xf32>
    %c0_15 = arith.constant 0 : index
    %c0_16 = arith.constant 0 : index
    %35 = vector.load %arg7[%c0_15, %c0_16] : memref<128x128xbf16, #tpu.memory_space<vmem>>, vector<128x128xbf16>
    %c0_17 = arith.constant 0 : index
    %c0_18 = arith.constant 0 : index
    %36 = vector.load %arg8[%c0_17, %c0_18] : memref<1x128xf32, #tpu.memory_space<vmem>>, vector<1x128xf32>
    %37 = vector.shape_cast %1 : vector<240x16xbf16> to vector<10x24x16xbf16>
    %38 = tpu.iota {dimensions = array<i32: 0>} : vector<16x128xi32>
    %39 = tpu.iota {dimensions = array<i32: 1>} : vector<16x128xi32>
    %40 = arith.cmpi eq, %38, %39 : vector<16x128xi32>
    %41 = arith.extui %40 : vector<16x128xi1> to vector<16x128xi32>
    %42 = arith.sitofp %41 : vector<16x128xi32> to vector<16x128xf32>
    %43 = arith.truncf %42 : vector<16x128xf32> to vector<16x128xbf16>
    %44 = vector.extract_strided_slice %32 {offsets = [0, 0, 0], sizes = [8, 16, 128], strides = [1, 1, 1]} : vector<10x24x128xf32> to vector<8x16x128xf32>
    %45 = vector.extract_strided_slice %33 {offsets = [0, 0], sizes = [1, 128], strides = [1, 1]} : vector<9x128xf32> to vector<1x128xf32>
    %46 = vector.shape_cast %45 : vector<1x128xf32> to vector<128xf32>
    %47 = vector.shape_cast %46 : vector<128xf32> to vector<1x1x128xf32>
    %48 = vector.broadcast %47 : vector<1x1x128xf32> to vector<8x16x128xf32>
    %49 = arith.mulf %44, %48 : vector<8x16x128xf32>
    %50 = vector.extract_strided_slice %32 {offsets = [0, 1, 0], sizes = [8, 16, 128], strides = [1, 1, 1]} : vector<10x24x128xf32> to vector<8x16x128xf32>
    %51 = vector.extract_strided_slice %33 {offsets = [1, 0], sizes = [1, 128], strides = [1, 1]} : vector<9x128xf32> to vector<1x128xf32>
    %52 = vector.shape_cast %51 : vector<1x128xf32> to vector<128xf32>
    %53 = vector.shape_cast %52 : vector<128xf32> to vector<1x1x128xf32>
    %54 = vector.broadcast %53 : vector<1x1x128xf32> to vector<8x16x128xf32>
    %55 = arith.mulf %50, %54 : vector<8x16x128xf32>
    %56 = arith.addf %49, %55 : vector<8x16x128xf32>
    %57 = vector.extract_strided_slice %32 {offsets = [0, 2, 0], sizes = [8, 16, 128], strides = [1, 1, 1]} : vector<10x24x128xf32> to vector<8x16x128xf32>
    %58 = vector.extract_strided_slice %33 {offsets = [2, 0], sizes = [1, 128], strides = [1, 1]} : vector<9x128xf32> to vector<1x128xf32>
    %59 = vector.shape_cast %58 : vector<1x128xf32> to vector<128xf32>
    %60 = vector.shape_cast %59 : vector<128xf32> to vector<1x1x128xf32>
    %61 = vector.broadcast %60 : vector<1x1x128xf32> to vector<8x16x128xf32>
    %62 = arith.mulf %57, %61 : vector<8x16x128xf32>
    %63 = arith.addf %56, %62 : vector<8x16x128xf32>
    %64 = vector.extract_strided_slice %32 {offsets = [1, 0, 0], sizes = [8, 16, 128], strides = [1, 1, 1]} : vector<10x24x128xf32> to vector<8x16x128xf32>
    %65 = vector.extract_strided_slice %33 {offsets = [3, 0], sizes = [1, 128], strides = [1, 1]} : vector<9x128xf32> to vector<1x128xf32>
    %66 = vector.shape_cast %65 : vector<1x128xf32> to vector<128xf32>
    %67 = vector.shape_cast %66 : vector<128xf32> to vector<1x1x128xf32>
    %68 = vector.broadcast %67 : vector<1x1x128xf32> to vector<8x16x128xf32>
    %69 = arith.mulf %64, %68 : vector<8x16x128xf32>
    %70 = arith.addf %63, %69 : vector<8x16x128xf32>
    %71 = vector.extract_strided_slice %32 {offsets = [1, 1, 0], sizes = [8, 16, 128], strides = [1, 1, 1]} : vector<10x24x128xf32> to vector<8x16x128xf32>
    %72 = vector.extract_strided_slice %33 {offsets = [4, 0], sizes = [1, 128], strides = [1, 1]} : vector<9x128xf32> to vector<1x128xf32>
    %73 = vector.shape_cast %72 : vector<1x128xf32> to vector<128xf32>
    %74 = vector.shape_cast %73 : vector<128xf32> to vector<1x1x128xf32>
    %75 = vector.broadcast %74 : vector<1x1x128xf32> to vector<8x16x128xf32>
    %76 = arith.mulf %71, %75 : vector<8x16x128xf32>
    %77 = arith.addf %70, %76 : vector<8x16x128xf32>
    %78 = vector.extract_strided_slice %32 {offsets = [1, 2, 0], sizes = [8, 16, 128], strides = [1, 1, 1]} : vector<10x24x128xf32> to vector<8x16x128xf32>
    %79 = vector.extract_strided_slice %33 {offsets = [5, 0], sizes = [1, 128], strides = [1, 1]} : vector<9x128xf32> to vector<1x128xf32>
    %80 = vector.shape_cast %79 : vector<1x128xf32> to vector<128xf32>
    %81 = vector.shape_cast %80 : vector<128xf32> to vector<1x1x128xf32>
    %82 = vector.broadcast %81 : vector<1x1x128xf32> to vector<8x16x128xf32>
    %83 = arith.mulf %78, %82 : vector<8x16x128xf32>
    %84 = arith.addf %77, %83 : vector<8x16x128xf32>
    %85 = vector.extract_strided_slice %32 {offsets = [2, 0, 0], sizes = [8, 16, 128], strides = [1, 1, 1]} : vector<10x24x128xf32> to vector<8x16x128xf32>
    %86 = vector.extract_strided_slice %33 {offsets = [6, 0], sizes = [1, 128], strides = [1, 1]} : vector<9x128xf32> to vector<1x128xf32>
    %87 = vector.shape_cast %86 : vector<1x128xf32> to vector<128xf32>
    %88 = vector.shape_cast %87 : vector<128xf32> to vector<1x1x128xf32>
    %89 = vector.broadcast %88 : vector<1x1x128xf32> to vector<8x16x128xf32>
    %90 = arith.mulf %85, %89 : vector<8x16x128xf32>
    %91 = arith.addf %84, %90 : vector<8x16x128xf32>
    %92 = vector.extract_strided_slice %32 {offsets = [2, 1, 0], sizes = [8, 16, 128], strides = [1, 1, 1]} : vector<10x24x128xf32> to vector<8x16x128xf32>
    %93 = vector.extract_strided_slice %33 {offsets = [7, 0], sizes = [1, 128], strides = [1, 1]} : vector<9x128xf32> to vector<1x128xf32>
    %94 = vector.shape_cast %93 : vector<1x128xf32> to vector<128xf32>
    %95 = vector.shape_cast %94 : vector<128xf32> to vector<1x1x128xf32>
    %96 = vector.broadcast %95 : vector<1x1x128xf32> to vector<8x16x128xf32>
    %97 = arith.mulf %92, %96 : vector<8x16x128xf32>
    %98 = arith.addf %91, %97 : vector<8x16x128xf32>
    %99 = vector.extract_strided_slice %32 {offsets = [2, 2, 0], sizes = [8, 16, 128], strides = [1, 1, 1]} : vector<10x24x128xf32> to vector<8x16x128xf32>
    %100 = vector.extract_strided_slice %33 {offsets = [8, 0], sizes = [1, 128], strides = [1, 1]} : vector<9x128xf32> to vector<1x128xf32>
    %101 = vector.shape_cast %100 : vector<1x128xf32> to vector<128xf32>
    %102 = vector.shape_cast %101 : vector<128xf32> to vector<1x1x128xf32>
    %103 = vector.broadcast %102 : vector<1x1x128xf32> to vector<8x16x128xf32>
    %104 = arith.mulf %99, %103 : vector<8x16x128xf32>
    %105 = arith.addf %98, %104 : vector<8x16x128xf32>
    %106 = vector.shape_cast %34 : vector<1x128xf32> to vector<1x1x128xf32>
    %107 = vector.broadcast %106 : vector<1x1x128xf32> to vector<8x16x128xf32>
    %108 = arith.addf %105, %107 : vector<8x16x128xf32>
    %cst_19 = arith.constant 0.000000e+00 : f32
    %cst_20 = arith.constant 6.000000e+00 : f32
    %109 = vector.broadcast %cst_19 : f32 to vector<8x16x128xf32>
    %110 = arith.maximumf %109, %108 : vector<8x16x128xf32>
    %111 = vector.broadcast %cst_20 : f32 to vector<8x16x128xf32>
    %112 = arith.minimumf %111, %110 : vector<8x16x128xf32>
    %113 = vector.shape_cast %112 : vector<8x16x128xf32> to vector<128x128xf32>
    %114 = arith.truncf %113 : vector<128x128xf32> to vector<128x128xbf16>
    %cst_21 = arith.constant dense<0.000000e+00> : vector<128x128xf32>
    %115 = tpu.matmul %114, %35, %cst_21 {dimension_numbers = #tpu.dot_dimension_numbers<[1], [0], [0], [1], [0, 0, 1, 1], [], []>} : vector<128x128xbf16>, vector<128x128xbf16>, vector<128x128xf32> -> vector<128x128xf32>
    %116 = vector.broadcast %36 : vector<1x128xf32> to vector<128x128xf32>
    %117 = arith.addf %115, %116 : vector<128x128xf32>
    %118 = vector.extract_strided_slice %37 {offsets = [1, 1, 0], sizes = [8, 16, 16], strides = [1, 1, 1]} : vector<10x24x16xbf16> to vector<8x16x16xbf16>
    %119 = vector.shape_cast %118 : vector<8x16x16xbf16> to vector<128x16xbf16>
    %cst_22 = arith.constant dense<0.000000e+00> : vector<128x128xf32>
    %120 = tpu.matmul %119, %43, %cst_22 {dimension_numbers = #tpu.dot_dimension_numbers<[1], [0], [0], [1], [0, 0, 1, 1], [], []>} : vector<128x16xbf16>, vector<16x128xbf16>, vector<128x128xf32> -> vector<128x128xf32>
    %121 = arith.addf %117, %120 : vector<128x128xf32>
    %122 = arith.truncf %121 : vector<128x128xf32> to vector<128x128xbf16>
    %c0_23 = arith.constant 0 : index
    %c0_24 = arith.constant 0 : index
    %c0_25 = arith.constant 0 : index
    %c0_26 = arith.constant 0 : index
    %123 = vector.load %arg9[%c0_23, %c0_24, %c0_25, %c0_26] : memref<1x1x128x128xbf16, #tpu.memory_space<vmem>>, vector<1x1x128x128xbf16>
    %124 = vector.shape_cast %123 : vector<1x1x128x128xbf16> to vector<128x128xbf16>
    %125 = vector.shape_cast %122 : vector<128x128xbf16> to vector<1x1x128x128xbf16>
    tpu.vector_store %arg9[%c0_23, %c0_24, %c0_25, %c0_26], %125 {strides = array<i32>} : memref<1x1x128x128xbf16, #tpu.memory_space<vmem>>, vector<1x1x128x128xbf16>,
    return
  }
  func.func @transform_0(%arg0: i32, %arg1: i32) -> (i32, i32, i32, i32) {
    %c0_i32 = arith.constant 0 : i32
    %c0_i32_0 = arith.constant 0 : i32
    %c0_i32_1 = arith.constant 0 : i32
    return %arg0, %arg1, %c0_i32, %c0_i32_0 : i32, i32, i32, i32
  }
  func.func @transform_1(%arg0: i32, %arg1: i32) -> (i32, i32) {
    %c0_i32 = arith.constant 0 : i32
    %c0_i32_0 = arith.constant 0 : i32
    %c0_i32_1 = arith.constant 0 : i32
    return %c0_i32, %c0_i32_0 : i32, i32
  }
  func.func @transform_2(%arg0: i32, %arg1: i32) -> (i32, i32) {
    %c0_i32 = arith.constant 0 : i32
    %c0_i32_0 = arith.constant 0 : i32
    %c0_i32_1 = arith.constant 0 : i32
    return %c0_i32, %c0_i32_0 : i32, i32
  }
  func.func @transform_3(%arg0: i32, %arg1: i32) -> (i32, i32) {
    %c0_i32 = arith.constant 0 : i32
    %c0_i32_0 = arith.constant 0 : i32
    %c0_i32_1 = arith.constant 0 : i32
    return %c0_i32, %c0_i32_0 : i32, i32
  }
  func.func @transform_4(%arg0: i32, %arg1: i32) -> (i32, i32) {
    %c0_i32 = arith.constant 0 : i32
    %c0_i32_0 = arith.constant 0 : i32
    %c0_i32_1 = arith.constant 0 : i32
    return %c0_i32, %c0_i32_0 : i32, i32
  }
  func.func @transform_5(%arg0: i32, %arg1: i32) -> (i32, i32) {
    %c0_i32 = arith.constant 0 : i32
    %c0_i32_0 = arith.constant 0 : i32
    %c0_i32_1 = arith.constant 0 : i32
    return %c0_i32, %c0_i32_0 : i32, i32
  }
  func.func @transform_6(%arg0: i32, %arg1: i32) -> (i32, i32) {
    %c0_i32 = arith.constant 0 : i32
    %c0_i32_0 = arith.constant 0 : i32
    %c0_i32_1 = arith.constant 0 : i32
    return %c0_i32, %c0_i32_0 : i32, i32
  }
  func.func @transform_7(%arg0: i32, %arg1: i32) -> (i32, i32, i32, i32) {
    %c0_i32 = arith.constant 0 : i32
    %c0_i32_0 = arith.constant 0 : i32
    %c0_i32_1 = arith.constant 0 : i32
    return %arg0, %arg1, %c0_i32, %c0_i32_0 : i32, i32, i32, i32
  }
}

</mosaic_0001>

<llo_original>
// kernel: inverted_residual_forward.1
$region0: #{inverted_residual_forward.1}
  #allocation0 [shape = 'u32[]', space=smem, size = 0x4, offset = 0x4, fixed_abs, tag = 'smem constant byte address 0x4 - core index']
  #allocation1 [shape = 'u32[72,128]{1,0:T(1,128)}', space=vmem, size = 0x9000, scoped, tag = 'internal scratch']
  %s0 = inlined_call_operand.vmem [shape: bf16[2,2,240,16], index: 0, kind: input, shape index: {}]
  %s1 = inlined_call_operand.vmem [shape: bf16[16,128], index: 1, kind: input, shape index: {}]
  %s2 = inlined_call_operand.vmem [shape: f32[1,128], index: 2, kind: input, shape index: {}]
  %s3 = inlined_call_operand.vmem [shape: f32[9,128], index: 3, kind: input, shape index: {}]
  %s4 = inlined_call_operand.vmem [shape: f32[1,128], index: 4, kind: input, shape index: {}]
  %s5 = inlined_call_operand.vmem [shape: bf16[128,128], index: 5, kind: input, shape index: {}]
  %s6 = inlined_call_operand.vmem [shape: f32[1,128], index: 6, kind: input, shape index: {}]
  %s7 = inlined_call_operand.vmem [shape: bf16[2,2,128,128], index: 7, kind: output, shape index: {}]
  %s8 = sld [smem:[#allocation0]]
  $region61: #{inverted_residual_forward.1} parent=0
    _
  %s10 = ssub.s32 1, %s8
  %s11 = scalar_select 0, %s10, %s8
  loop: start=0, step=1, limit=6
  $region2: #{inverted_residual_forward.1} parent=0 // loop_pre_header
    _
  $region3: #{inverted_residual_forward.1} parent=0 // loop_header
    %s13 = sphi 0, %s17
    %p14 = scmp.ge.s32.totalorder %s13, 6
    %s20 = sphi 0, %s32
    %s21 = sphi 0, %s28
    %s22 = sphi 0, %s20
    %s23 = sphi 0, %s21
    %s24 = sphi 0, %s22
    %s25 = sphi 0, %s23
    %s37 = sphi 0, %s39
    %s40 = sphi 0, %s37
    %s41 = sphi 0, %s40
    %s57 = sphi 0, %s41
    %s61 = sphi 0, %s61
    %s63 = sphi 0, %s61
    %s64 = sphi 0, %s63
    %s78 = sphi 0, %s64
    %s82 = sphi 0, %s82
    %s84 = sphi 0, %s82
    %s85 = sphi 0, %s84
    %s99 = sphi 0, %s85
    %s103 = sphi 0, %s103
    %s105 = sphi 0, %s103
    %s106 = sphi 0, %s105
    %s120 = sphi 0, %s106
    %s124 = sphi 0, %s124
    %s126 = sphi 0, %s124
    %s127 = sphi 0, %s126
    %s141 = sphi 0, %s127
    %s145 = sphi 0, %s145
    %s147 = sphi 0, %s145
    %s148 = sphi 0, %s147
    %s162 = sphi 0, %s148
    %s166 = sphi 0, %s166
    %s168 = sphi 0, %s166
    %s169 = sphi 0, %s168
    %s183 = sphi 0, %s169
    %s191 = sphi 0, %s193
    %s194 = sphi 0, %s191
    %s195 = sphi 0, %s194
    %s211 = sphi 0, %s195
  $region4: #{inverted_residual_forward.1} parent=0 // loop_header_branch
    %16 = sbr.rel (%p14) target = $region8
  $region5: #{inverted_residual_forward.1} parent=0 // loop_body
    %s18 = ssub.s32 %s13, 1
    %s19 = ssub.s32 %s13, 2
    %s26 = sadd.s32 1, %s21
    %p27 = scmp.ge.s32.totalorder %s26, 2
    %s28 = scalar_select %p27, 0, %s26
    %s29 = sadd.s32 1, %s20
    %s30 = scalar_select %p27, %s29, %s20
    %p31 = scmp.ge.s32.totalorder %s30, 2
    %s32 = scalar_select %p31, 0, %s30
    %s33 = ssub.s32 %s20, %s32
    %s34 = ssub.s32 %s21, %s28
    %s35 = sor.u32 %s33, %s34
    %p36 = scmp.eq.s32.totalorder %s35, 0
    %s38 = sadd.s32 %s37, 1
    %s39 = scalar_select %p36, %s37, %s38
    %p42 = pneg %p36
    %p43 = scmp.eq.s32.totalorder %s13, 3
    %p44 = por %p42, %p43
    %p45 = scmp.ne.s32.totalorder %s37, %s40
    %p46 = scmp.eq.s32.totalorder %s13, 0
    %p47 = por %p45, %p46
    %p48 = scmp.ne.s32.totalorder %s37, %s40
    %p49 = scmp.eq.s32.totalorder %s18, 3
    %p50 = por %p48, %p49
    %p51 = scmp.ne.s32.totalorder %s40, %s41
    %p52 = scmp.eq.s32.totalorder %s18, 0
    %p53 = por %p51, %p52
    %p54 = scmp.ne.s32.totalorder %s40, %s41
    %p55 = scmp.eq.s32.totalorder %s19, 3
    %p56 = por %p54, %p55
    %p58 = scmp.ne.s32.totalorder %s41, %s57
    %p59 = scmp.eq.s32.totalorder %s19, 0
    %p60 = por %p58, %p59
    %s62 = sadd.s32 %s61, 1
    %p65 = scmp.eq.s32.totalorder %s13, 3
    %p66 = scmp.ne.s32.totalorder %s61, %s63
    %p67 = scmp.eq.s32.totalorder %s13, 0
    %p68 = por %p66, %p67
    %p69 = scmp.ne.s32.totalorder %s61, %s63
    %p70 = scmp.eq.s32.totalorder %s18, 3
    %p71 = por %p69, %p70
    %p72 = scmp.ne.s32.totalorder %s63, %s64
    %p73 = scmp.eq.s32.totalorder %s18, 0
    %p74 = por %p72, %p73
    %p75 = scmp.ne.s32.totalorder %s63, %s64
    %p76 = scmp.eq.s32.totalorder %s19, 3
    %p77 = por %p75, %p76
    %p79 = scmp.ne.s32.totalorder %s64, %s78
    %p80 = scmp.eq.s32.totalorder %s19, 0
    %p81 = por %p79, %p80
    %s83 = sadd.s32 %s82, 1
    %p86 = scmp.eq.s32.totalorder %s13, 3
    %p87 = scmp.ne.s32.totalorder %s82, %s84
    %p88 = scmp.eq.s32.totalorder %s13, 0
    %p89 = por %p87, %p88
    %p90 = scmp.ne.s32.totalorder %s82, %s84
    %p91 = scmp.eq.s32.totalorder %s18, 3
    %p92 = por %p90, %p91
    %p93 = scmp.ne.s32.totalorder %s84, %s85
    %p94 = scmp.eq.s32.totalorder %s18, 0
    %p95 = por %p93, %p94
    %p96 = scmp.ne.s32.totalorder %s84, %s85
    %p97 = scmp.eq.s32.totalorder %s19, 3
    %p98 = por %p96, %p97
    %p100 = scmp.ne.s32.totalorder %s85, %s99
    %p101 = scmp.eq.s32.totalorder %s19, 0
    %p102 = por %p100, %p101
    %s104 = sadd.s32 %s103, 1
    %p107 = scmp.eq.s32.totalorder %s13, 3
    %p108 = scmp.ne.s32.totalorder %s103, %s105
    %p109 = scmp.eq.s32.totalorder %s13, 0
    %p110 = por %p108, %p109
    %p111 = scmp.ne.s32.totalorder %s103, %s105
    %p112 = scmp.eq.s32.totalorder %s18, 3
    %p113 = por %p111, %p112
    %p114 = scmp.ne.s32.totalorder %s105, %s106
    %p115 = scmp.eq.s32.totalorder %s18, 0
    %p116 = por %p114, %p115
    %p117 = scmp.ne.s32.totalorder %s105, %s106
    %p118 = scmp.eq.s32.totalorder %s19, 3
    %p119 = por %p117, %p118
    %p121 = scmp.ne.s32.totalorder %s106, %s120
    %p122 = scmp.eq.s32.totalorder %s19, 0
    %p123 = por %p121, %p122
    %s125 = sadd.s32 %s124, 1
    %p128 = scmp.eq.s32.totalorder %s13, 3
    %p129 = scmp.ne.s32.totalorder %s124, %s126
    %p130 = scmp.eq.s32.totalorder %s13, 0
    %p131 = por %p129, %p130
    %p132 = scmp.ne.s32.totalorder %s124, %s126
    %p133 = scmp.eq.s32.totalorder %s18, 3
    %p134 = por %p132, %p133
    %p135 = scmp.ne.s32.totalorder %s126, %s127
    %p136 = scmp.eq.s32.totalorder %s18, 0
    %p137 = por %p135, %p136
    %p138 = scmp.ne.s32.totalorder %s126, %s127
    %p139 = scmp.eq.s32.totalorder %s19, 3
    %p140 = por %p138, %p139
    %p142 = scmp.ne.s32.totalorder %s127, %s141
    %p143 = scmp.eq.s32.totalorder %s19, 0
    %p144 = por %p142, %p143
    %s146 = sadd.s32 %s145, 1
    %p149 = scmp.eq.s32.totalorder %s13, 3
    %p150 = scmp.ne.s32.totalorder %s145, %s147
    %p151 = scmp.eq.s32.totalorder %s13, 0
    %p152 = por %p150, %p151
    %p153 = scmp.ne.s32.totalorder %s145, %s147
    %p154 = scmp.eq.s32.totalorder %s18, 3
    %p155 = por %p153, %p154
    %p156 = scmp.ne.s32.totalorder %s147, %s148
    %p157 = scmp.eq.s32.totalorder %s18, 0
    %p158 = por %p156, %p157
    %p159 = scmp.ne.s32.totalorder %s147, %s148
    %p160 = scmp.eq.s32.totalorder %s19, 3
    %p161 = por %p159, %p160
    %p163 = scmp.ne.s32.totalorder %s148, %s162
    %p164 = scmp.eq.s32.totalorder %s19, 0
    %p165 = por %p163, %p164
    %s167 = sadd.s32 %s166, 1
    %p170 = scmp.eq.s32.totalorder %s13, 3
    %p171 = scmp.ne.s32.totalorder %s166, %s168
    %p172 = scmp.eq.s32.totalorder %s13, 0
    %p173 = por %p171, %p172
    %p174 = scmp.ne.s32.totalorder %s166, %s168
    %p175 = scmp.eq.s32.totalorder %s18, 3
    %p176 = por %p174, %p175
    %p177 = scmp.ne.s32.totalorder %s168, %s169
    %p178 = scmp.eq.s32.totalorder %s18, 0
    %p179 = por %p177, %p178
    %p180 = scmp.ne.s32.totalorder %s168, %s169
    %p181 = scmp.eq.s32.totalorder %s19, 3
    %p182 = por %p180, %p181
    %p184 = scmp.ne.s32.totalorder %s169, %s183
    %p185 = scmp.eq.s32.totalorder %s19, 0
    %p186 = por %p184, %p185
    %s187 = ssub.s32 %s20, %s32
    %s188 = ssub.s32 %s21, %s28
    %s189 = sor.u32 %s187, %s188
    %p190 = scmp.eq.s32.totalorder %s189, 0
    %s192 = sadd.s32 %s191, 1
    %s193 = scalar_select %p190, %s191, %s192
    %p196 = pneg %p190
    %p197 = scmp.eq.s32.totalorder %s13, 3
    %p198 = por %p196, %p197
    %p199 = scmp.ne.s32.totalorder %s191, %s194
    %p200 = scmp.eq.s32.totalorder %s13, 0
    %p201 = por %p199, %p200
    %p202 = scmp.ne.s32.totalorder %s191, %s194
    %p203 = scmp.eq.s32.totalorder %s18, 3
    %p204 = por %p202, %p203
    %p205 = scmp.ne.s32.totalorder %s194, %s195
    %p206 = scmp.eq.s32.totalorder %s18, 0
    %p207 = por %p205, %p206
    %p208 = scmp.ne.s32.totalorder %s194, %s195
    %p209 = scmp.eq.s32.totalorder %s19, 3
    %p210 = por %p208, %p209
    %p212 = scmp.ne.s32.totalorder %s195, %s211
    %p213 = scmp.eq.s32.totalorder %s19, 0
    %p214 = por %p212, %p213
    %p215 = scmp.le.s32.totalorder 1, %s13
    %p216 = scmp.lt.s32.totalorder %s13, 5
    %p217 = pnand %p215, %p216
    %p218 = pneg %p217
    // Predicated region
    $region9: #{inverted_residual_forward.1} parent=5 // pred_check
      _
    $region10: #{inverted_residual_forward.1} parent=5 // pred_check_branch
      %220 = sbr.rel (%p217) target = $region12
    $region11: #{inverted_residual_forward.1} parent=5 // pred_region
      %s221 = ssub.s32 %s13, 1
      // Predicated region
      $region13: #{inverted_residual_forward.1} parent=11 // pred_check
        %p222 = pneg %p74
      $region14: #{inverted_residual_forward.1} parent=11 // pred_check_branch
        %224 = sbr.rel (%p222) target = $region16
      $region15: #{inverted_residual_forward.1} parent=11 // pred_region
        _
      $region16: #{inverted_residual_forward.1} parent=11 // pred_fallthru
        _
      // Predicated region
      $region17: #{inverted_residual_forward.1} parent=11 // pred_check
        %p225 = pneg %p95
      $region18: #{inverted_residual_forward.1} parent=11 // pred_check_branch
        %227 = sbr.rel (%p225) target = $region20
      $region19: #{inverted_residual_forward.1} parent=11 // pred_region
        _
      $region20: #{inverted_residual_forward.1} parent=11 // pred_fallthru
        _
      // Predicated region
      $region21: #{inverted_residual_forward.1} parent=11 // pred_check
        %p228 = pneg %p116
      $region22: #{inverted_residual_forward.1} parent=11 // pred_check_branch
        %230 = sbr.rel (%p228) target = $region24
      $region23: #{inverted_residual_forward.1} parent=11 // pred_region
        _
      $region24: #{inverted_residual_forward.1} parent=11 // pred_fallthru
        _
      // Predicated region
      $region25: #{inverted_residual_forward.1} parent=11 // pred_check
        %p231 = pneg %p137
      $region26: #{inverted_residual_forward.1} parent=11 // pred_check_branch
        %233 = sbr.rel (%p231) target = $region28
      $region27: #{inverted_residual_forward.1} parent=11 // pred_region
        _
      $region28: #{inverted_residual_forward.1} parent=11 // pred_fallthru
        _
      // Predicated region
      $region29: #{inverted_residual_forward.1} parent=11 // pred_check
        %p234 = pneg %p158
      $region30: #{inverted_residual_forward.1} parent=11 // pred_check_branch
        %236 = sbr.rel (%p234) target = $region32
      $region31: #{inverted_residual_forward.1} parent=11 // pred_region
        _
      $region32: #{inverted_residual_forward.1} parent=11 // pred_fallthru
        _
      // Predicated region
      $region33: #{inverted_residual_forward.1} parent=11 // pred_check
        %p237 = pneg %p179
      $region34: #{inverted_residual_forward.1} parent=11 // pred_check_branch
        %239 = sbr.rel (%p237) target = $region36
      $region35: #{inverted_residual_forward.1} parent=11 // pred_region
        _
      $region36: #{inverted_residual_forward.1} parent=11 // pred_fallthru
        _
    $region12: #{inverted_residual_forward.1} parent=5 // pred_fallthru
      _
    %p240 = scmp.lt.s32.totalorder %s13, 4
    // Predicated region
    $region37: #{inverted_residual_forward.1} parent=5 // pred_check
      %p241 = pneg %p240
    $region38: #{inverted_residual_forward.1} parent=5 // pred_check_branch
      %243 = sbr.rel (%p241) target = $region40
    $region39: #{inverted_residual_forward.1} parent=5 // pred_region
      // Predicated region
      $region41: #{inverted_residual_forward.1} parent=39 // pred_check
        %p244 = pneg %p47
      $region42: #{inverted_residual_forward.1} parent=39 // pred_check_branch
        %246 = sbr.rel (%p244) target = $region44
      $region43: #{inverted_residual_forward.1} parent=39 // pred_region
        %p247 = scmp.lt.s32.totalorder %s20, 1
        %s248 = scalar_select %p247, %s20, 1
        %p249 = scmp.lt.s32.totalorder %s21, 1
        %s250 = scalar_select %p249, %s21, 1
        %s251 = smul.addr %s250, 30
        %s252 = smul.addr %s248, 60
        %s253 = sadd.s32 %s251, %s252
        %s254 = smul.addr %s253, 4
        %s255 = scalar_lea.vmem %s0, %s254
      $region44: #{inverted_residual_forward.1} parent=39 // pred_fallthru
        _
    $region40: #{inverted_residual_forward.1} parent=5 // pred_fallthru
      _
    %p256 = scmp.le.s32.totalorder 1, %s13
    %p257 = scmp.lt.s32.totalorder %s13, 5
    %p258 = pnand %p256, %p257
    %p259 = pneg %p258
    // Predicated region
    $region45: #{inverted_residual_forward.1} parent=5 // pred_check
      _
    $region46: #{inverted_residual_forward.1} parent=5 // pred_check_branch
      %261 = sbr.rel (%p258) target = $region48
    $region47: #{inverted_residual_forward.1} parent=5 // pred_region
      %s262 = ssub.s32 %s13, 1
      %p263 = scmp.lt.s32.totalorder %s22, 1
      %s264 = scalar_select %p263, %s22, 1
      %p265 = scmp.lt.s32.totalorder %s23, 1
      %s266 = scalar_select %p265, %s23, 1
      %s267 = smul.addr %s266, 30
      %s268 = smul.addr %s264, 60
      %s269 = sadd.s32 %s267, %s268
      %s270 = smul.addr %s269, 4
      %s271 = scalar_lea.vmem %s0, %s270
      %p272 = pneg %p53
      %p273 = pneg %p50
      %p274 = pneg %p74
      %p275 = pneg %p71
      %p276 = pneg %p95
      %p277 = pneg %p92
      %p278 = pneg %p116
      %p279 = pneg %p113
      %p280 = pneg %p137
      %p281 = pneg %p134
      %p282 = pneg %p158
      %p283 = pneg %p155
      %p284 = pneg %p179
      %p285 = pneg %p176
      %p286 = pneg %p207
      %p287 = pneg %p204
      %p288 = scmp.lt.s32.totalorder %s22, 1
      %s289 = scalar_select %p288, %s22, 1
      %p290 = scmp.lt.s32.totalorder %s23, 1
      %s291 = scalar_select %p290, %s23, 1
      %s292 = smul.addr %s291, 16
      %s293 = smul.addr %s289, 32
      %s294 = sadd.s32 %s292, %s293
      %s295 = smul.addr %s294, 4
      %s296 = scalar_lea.vmem %s7, %s295
      %p297 = scmp.lt.s32.totalorder %s22, 1
      %s298 = scalar_select %p297, %s22, 1
      %p299 = scmp.lt.s32.totalorder %s23, 1
      %s300 = scalar_select %p299, %s23, 1
      %s301 = smul.addr %s300, 30
      %s302 = smul.addr %s298, 60
      %s303 = sadd.s32 %s301, %s302
      %s304 = smul.addr %s303, 4
      %s305 = scalar_lea.vmem %s0, %s304
      %p306 = scmp.lt.s32.totalorder %s22, 1
      %s307 = scalar_select %p306, %s22, 1
      %p308 = scmp.lt.s32.totalorder %s23, 1
      %s309 = scalar_select %p308, %s23, 1
      %s310 = smul.addr %s309, 16
      %s311 = smul.addr %s307, 32
      %s312 = sadd.s32 %s310, %s311
      %s313 = smul.addr %s312, 4
      %s314 = scalar_lea.vmem %s7, %s313
      %v316 = vld [vmem:[%s305] sm:$0xf]
      %v317 = vld [vmem:[%s305 + $0x4] sm:$0xf]
      %v318 = vld [vmem:[%s305 + $0x8] sm:$0xf]
      %v319 = vld [vmem:[%s305 + $0xc] sm:$0xf]
      %v320 = vld [vmem:[%s305 + $0x10] sm:$0xf]
      %v321 = vld [vmem:[%s305 + $0x14] sm:$0xf]
      %v322 = vld [vmem:[%s305 + $0x18] sm:$0xf]
      %v323 = vld [vmem:[%s305 + $0x1c] sm:$0xf]
      %v324 = vld [vmem:[%s305 + $0x20] sm:$0xf]
      %v325 = vld [vmem:[%s305 + $0x24] sm:$0xf]
      %v326 = vld [vmem:[%s305 + $0x28] sm:$0xf]
      %v327 = vld [vmem:[%s305 + $0x2c] sm:$0xf]
      %v328 = vld [vmem:[%s305 + $0x30] sm:$0xf]
      %v329 = vld [vmem:[%s305 + $0x34] sm:$0xf]
      %v330 = vld [vmem:[%s305 + $0x38] sm:$0xf]
      %v331 = vld [vmem:[%s305 + $0x3c] sm:$0xf]
      %v332 = vld [vmem:[%s305 + $0x40] sm:$0xf]
      %v333 = vld [vmem:[%s305 + $0x44] sm:$0xf]
      %v334 = vld [vmem:[%s305 + $0x48] sm:$0xf]
      %v335 = vld [vmem:[%s305 + $0x4c] sm:$0xf]
      %v336 = vld [vmem:[%s305 + $0x50] sm:$0xf]
      %v337 = vld [vmem:[%s305 + $0x54] sm:$0xf]
      %v338 = vld [vmem:[%s305 + $0x58] sm:$0xf]
      %v339 = vld [vmem:[%s305 + $0x5c] sm:$0xf]
      %v340 = vld [vmem:[%s305 + $0x60] sm:$0xf]
      %v341 = vld [vmem:[%s305 + $0x64] sm:$0xf]
      %v342 = vld [vmem:[%s305 + $0x68] sm:$0xf]
      %v343 = vld [vmem:[%s305 + $0x6c] sm:$0xf]
      %v344 = vld [vmem:[%s305 + $0x70] sm:$0xf]
      %v345 = vld [vmem:[%s305 + $0x74] sm:$0xf]
      %v346 = vld [vmem:[%s1] sm:$0xf]
      %v347 = vld [vmem:[%s1 + $0x4] sm:$0xf]
      %v348 = vld [vmem:[%s2] sm:$0x1]
      %v350 = vperm.slane %v348, 0
      %v382 = vunpack.c.l.b16 %v316
      %v383 = vunpack.c.l.b16 %v317
      %v384 = vunpack.c.l.b16 %v318
      %v385 = vunpack.c.l.b16 %v319
      %v386 = vunpack.c.l.b16 %v320
      %v387 = vunpack.c.l.b16 %v321
      %v388 = vunpack.c.l.b16 %v322
      %v389 = vunpack.c.l.b16 %v323
      %v390 = vunpack.c.l.b16 %v324
      %v391 = vunpack.c.l.b16 %v325
      %v392 = vunpack.c.l.b16 %v326
      %v393 = vunpack.c.l.b16 %v327
      %v394 = vunpack.c.l.b16 %v328
      %v395 = vunpack.c.l.b16 %v329
      %v396 = vunpack.c.l.b16 %v330
      %v397 = vunpack.c.l.b16 %v331
      %v398 = vunpack.c.l.b16 %v332
      %v399 = vunpack.c.l.b16 %v333
      %v400 = vunpack.c.l.b16 %v334
      %v401 = vunpack.c.l.b16 %v335
      %v402 = vunpack.c.l.b16 %v336
      %v403 = vunpack.c.l.b16 %v337
      %v404 = vunpack.c.l.b16 %v338
      %v405 = vunpack.c.l.b16 %v339
      %v406 = vunpack.c.l.b16 %v340
      %v407 = vunpack.c.l.b16 %v341
      %v408 = vunpack.c.l.b16 %v342
      %v409 = vunpack.c.l.b16 %v343
      %v410 = vunpack.c.l.b16 %v344
      %v411 = vunpack.c.l.b16 %v345
      %v412 = vpack.c.b16 %v383, %v382
      %v413 = vpack.c.b16 %v385, %v384
      %v414 = vpack.c.b16 %v387, %v386
      %v415 = vpack.c.b16 %v389, %v388
      %v416 = vpack.c.b16 %v391, %v390
      %v417 = vpack.c.b16 %v393, %v392
      %v418 = vpack.c.b16 %v395, %v394
      %v419 = vpack.c.b16 %v397, %v396
      %v420 = vpack.c.b16 %v399, %v398
      %v421 = vpack.c.b16 %v401, %v400
      %v422 = vpack.c.b16 %v403, %v402
      %v423 = vpack.c.b16 %v405, %v404
      %v424 = vpack.c.b16 %v407, %v406
      %v425 = vpack.c.b16 %v409, %v408
      %v426 = vpack.c.b16 %v411, %v410
      %v429 = vunpack.c.l.b16 %v346
      %v430 = vunpack.c.l.b16 %v347
      %v431 = vpack.c.b16 %v430, %v429
      %vm433 = vcmask 130048
      %v435 = vsel %vm433, %v412, 0
      %v438 = vsel %vm433, %v413, 0
      %v441 = vsel %vm433, %v414, 0
      %v444 = vsel %vm433, %v415, 0
      %v447 = vsel %vm433, %v416, 0
      %v450 = vsel %vm433, %v417, 0
      %v453 = vsel %vm433, %v418, 0
      %v456 = vsel %vm433, %v419, 0
      %v459 = vsel %vm433, %v420, 0
      %v462 = vsel %vm433, %v421, 0
      %v465 = vsel %vm433, %v422, 0
      %v468 = vsel %vm433, %v423, 0
      %v471 = vsel %vm433, %v424, 0
      %v474 = vsel %vm433, %v425, 0
      %v477 = vsel %vm433, %v426, 0
      %479 = vmatpush.bf16.msra.mxu0 0
      %480 = vmatpush.bf16.msra.mxu0 0
      %481 = vmatpush.bf16.msra.mxu0 0
      %482 = vmatpush.bf16.msra.mxu0 0
      %483 = vmatpush.bf16.msra.mxu0 0
      %484 = vmatpush.bf16.msra.mxu0 0
      %485 = vmatpush.bf16.msra.mxu0 0
      %486 = vmatpush.bf16.msra.mxu0 %v431
      %487 = vmatmul.bf16.gmra.mxu0 %v435
      %v488 = vpop.f32.mrf.mxu0
      %v489 = vadd.f32 %v350, %v488
      %v490 = vpop.f32.mrf.mxu0
      %v491 = vadd.f32 %v350, %v490
      %492 = vmatmul.bf16.gmra.mxu0 %v438
      %v493 = vpop.f32.mrf.mxu0
      %v494 = vadd.f32 %v350, %v493
      %v495 = vpop.f32.mrf.mxu0
      %v496 = vadd.f32 %v350, %v495
      %497 = vmatmul.bf16.gmra.mxu0 %v441
      %v498 = vpop.f32.mrf.mxu0
      %v499 = vadd.f32 %v350, %v498
      %v500 = vpop.f32.mrf.mxu0
      %v501 = vadd.f32 %v350, %v500
      %502 = vmatmul.bf16.gmra.mxu0 %v444
      %v503 = vpop.f32.mrf.mxu0
      %v504 = vadd.f32 %v350, %v503
      %v505 = vpop.f32.mrf.mxu0
      %v506 = vadd.f32 %v350, %v505
      %507 = vmatmul.bf16.gmra.mxu0 %v447
      %v508 = vpop.f32.mrf.mxu0
      %v509 = vadd.f32 %v350, %v508
      %v510 = vpop.f32.mrf.mxu0
      %v511 = vadd.f32 %v350, %v510
      %512 = vmatmul.bf16.gmra.mxu0 %v450
      %v513 = vpop.f32.mrf.mxu0
      %v514 = vadd.f32 %v350, %v513
      %v515 = vpop.f32.mrf.mxu0
      %v516 = vadd.f32 %v350, %v515
      %517 = vmatmul.bf16.gmra.mxu0 %v453
      %v518 = vpop.f32.mrf.mxu0
      %v519 = vadd.f32 %v350, %v518
      %v520 = vpop.f32.mrf.mxu0
      %v521 = vadd.f32 %v350, %v520
      %522 = vmatmul.bf16.gmra.mxu0 %v456
      %v523 = vpop.f32.mrf.mxu0
      %v524 = vadd.f32 %v350, %v523
      %v525 = vpop.f32.mrf.mxu0
      %v526 = vadd.f32 %v350, %v525
      %527 = vmatmul.bf16.gmra.mxu0 %v459
      %v528 = vpop.f32.mrf.mxu0
      %v529 = vadd.f32 %v350, %v528
      %v530 = vpop.f32.mrf.mxu0
      %v531 = vadd.f32 %v350, %v530
      %532 = vmatmul.bf16.gmra.mxu0 %v462
      %v533 = vpop.f32.mrf.mxu0
      %v534 = vadd.f32 %v350, %v533
      %v535 = vpop.f32.mrf.mxu0
      %v536 = vadd.f32 %v350, %v535
      %537 = vmatmul.bf16.gmra.mxu0 %v465
      %v538 = vpop.f32.mrf.mxu0
      %v539 = vadd.f32 %v350, %v538
      %v540 = vpop.f32.mrf.mxu0
      %v541 = vadd.f32 %v350, %v540
      %542 = vmatmul.bf16.gmra.mxu0 %v468
      %v543 = vpop.f32.mrf.mxu0
      %v544 = vadd.f32 %v350, %v543
      %v545 = vpop.f32.mrf.mxu0
      %v546 = vadd.f32 %v350, %v545
      %547 = vmatmul.bf16.gmra.mxu0 %v471
      %v548 = vpop.f32.mrf.mxu0
      %v549 = vadd.f32 %v350, %v548
      %v550 = vpop.f32.mrf.mxu0
      %v551 = vadd.f32 %v350, %v550
      %552 = vmatmul.bf16.gmra.mxu0 %v474
      %v553 = vpop.f32.mrf.mxu0
      %v554 = vadd.f32 %v350, %v553
      %v555 = vpop.f32.mrf.mxu0
      %v556 = vadd.f32 %v350, %v555
      %557 = vmatmul.bf16.gmra.mxu0 %v477
      %v558 = vpop.f32.mrf.mxu0
      %v559 = vadd.f32 %v350, %v558
      %v560 = vpop.f32.mrf.mxu0
      %v561 = vadd.f32 %v350, %v560
      %562 = vdwg.mxu0
      %v563 = vmax.f32 %v489, 0.0
      %v564 = vmax.f32 %v491, 0.0
      %v565 = vmax.f32 %v494, 0.0
      %v566 = vmax.f32 %v496, 0.0
      %v567 = vmax.f32 %v499, 0.0
      %v568 = vmax.f32 %v501, 0.0
      %v569 = vmax.f32 %v504, 0.0
      %v570 = vmax.f32 %v506, 0.0
      %v571 = vmax.f32 %v509, 0.0
      %v572 = vmax.f32 %v511, 0.0
      %v573 = vmax.f32 %v514, 0.0
      %v574 = vmax.f32 %v516, 0.0
      %v575 = vmax.f32 %v519, 0.0
      %v576 = vmax.f32 %v521, 0.0
      %v577 = vmax.f32 %v524, 0.0
      %v578 = vmax.f32 %v526, 0.0
      %v579 = vmax.f32 %v529, 0.0
      %v580 = vmax.f32 %v531, 0.0
      %v581 = vmax.f32 %v534, 0.0
      %v582 = vmax.f32 %v536, 0.0
      %v583 = vmax.f32 %v539, 0.0
      %v584 = vmax.f32 %v541, 0.0
      %v585 = vmax.f32 %v544, 0.0
      %v586 = vmax.f32 %v546, 0.0
      %v587 = vmax.f32 %v549, 0.0
      %v588 = vmax.f32 %v551, 0.0
      %v589 = vmax.f32 %v554, 0.0
      %v590 = vmax.f32 %v556, 0.0
      %v591 = vmax.f32 %v559, 0.0
      %v592 = vmax.f32 %v561, 0.0
      %v593 = vmin.f32 %v563, 6.0
      %v594 = vmin.f32 %v564, 6.0
      %v595 = vmin.f32 %v565, 6.0
      %v596 = vmin.f32 %v566, 6.0
      %v597 = vmin.f32 %v567, 6.0
      %v598 = vmin.f32 %v568, 6.0
      %v599 = vmin.f32 %v569, 6.0
      %v600 = vmin.f32 %v570, 6.0
      %v601 = vmin.f32 %v571, 6.0
      %v602 = vmin.f32 %v572, 6.0
      %v603 = vmin.f32 %v573, 6.0
      %v604 = vmin.f32 %v574, 6.0
      %v605 = vmin.f32 %v575, 6.0
      %v606 = vmin.f32 %v576, 6.0
      %v607 = vmin.f32 %v577, 6.0
      %v608 = vmin.f32 %v578, 6.0
      %v609 = vmin.f32 %v579, 6.0
      %v610 = vmin.f32 %v580, 6.0
      %v611 = vmin.f32 %v581, 6.0
      %v612 = vmin.f32 %v582, 6.0
      %v613 = vmin.f32 %v583, 6.0
      %v614 = vmin.f32 %v584, 6.0
      %v615 = vmin.f32 %v585, 6.0
      %v616 = vmin.f32 %v586, 6.0
      %v617 = vmin.f32 %v587, 6.0
      %v618 = vmin.f32 %v588, 6.0
      %v619 = vmin.f32 %v589, 6.0
      %v620 = vmin.f32 %v590, 6.0
      %v621 = vmin.f32 %v591, 6.0
      %v622 = vmin.f32 %v592, 6.0
      %v623 = vlaneseq
      %v624 = vshrl.u32 %v623, 7
      %v625 = vadd.s32 %v624, 8
      %s626 = smul.u32 %s23, 8
      %v627 = vstv %s626
      %v628 = vadd.s32 %v624, %v627
      %v629 = vadd.s32 %v625, %v627
      %v630 = vlaneseq
      %v631 = vand.u32 %v630, 127
      %vm632 = vcmp.ge.s32.totalorder %v628, 1
      %vm633 = vcmp.ge.s32.totalorder %v629, 1
      %vm634 = vcmp.le.s32.totalorder %v628, 16
      %vm635 = vcmp.le.s32.totalorder %v629, 16
      %vm636 = vmand %vm632, %vm634
      %vm637 = vmand %vm633, %vm635
      %vm638 = vcmp.ge.s32.totalorder %v631, 1
      %vm639 = vmand %vm636, %vm638
      %vm640 = vmand %vm637, %vm638
      %vm641 = vcmp.le.s32.totalorder %v631, 16
      %vm642 = vmand %vm639, %vm641
      %vm643 = vmand %vm640, %vm641
      %v644 = vsel %vm642, 1, 0
      %v645 = vsel %vm643, 1, 0
      %v646 = vcvt.s32.f32 %v644
      %v647 = vcvt.s32.f32 %v645
      %v648 = vperm.slane %v646, 0
      %v649 = vlaneseq
      %v650 = vshrl.u32 %v649, 7
      %652 = vset.pattern.permute.xlu0 %v650
      %653 = vperm.xlu0 %652, %v648
      %v654 = vpop.permute.xlu0 %653
      %v655 = vlaneseq
      %v656 = vshrl.u32 %v655, 7
      %v657 = vadd.s32 %v656, 8
      %658 = vset.pattern.permute.xlu0 %v657
      %659 = vperm.xlu0 %658, %v648
      %v660 = vpop.permute.xlu0 %659
      %v661 = vlaneseq
      %v662 = vshrl.u32 %v661, 7
      %v663 = vadd.s32 %v662, 16
      %664 = vset.pattern.permute.xlu0 %v663
      %665 = vperm.xlu0 %664, %v648
      %v666 = vpop.permute.xlu0 %665
      %v667 = vperm.slane %v646, 1
      %v668 = vlaneseq
      %v669 = vshrl.u32 %v668, 7
      %671 = vset.pattern.permute.xlu0 %v669
      %672 = vperm.xlu0 %671, %v667
      %v673 = vpop.permute.xlu0 %672
      %v674 = vlaneseq
      %v675 = vshrl.u32 %v674, 7
      %v676 = vadd.s32 %v675, 8
      %677 = vset.pattern.permute.xlu0 %v676
      %678 = vperm.xlu0 %677, %v667
      %v679 = vpop.permute.xlu0 %678
      %v680 = vlaneseq
      %v681 = vshrl.u32 %v680, 7
      %v682 = vadd.s32 %v681, 16
      %683 = vset.pattern.permute.xlu0 %v682
      %684 = vperm.xlu0 %683, %v667
      %v685 = vpop.permute.xlu0 %684
      %v686 = vperm.slane %v646, 2
      %v687 = vlaneseq
      %v688 = vshrl.u32 %v687, 7
      %690 = vset.pattern.permute.xlu0 %v688
      %691 = vperm.xlu0 %690, %v686
      %v692 = vpop.permute.xlu0 %691
      %v693 = vlaneseq
      %v694 = vshrl.u32 %v693, 7
      %v695 = vadd.s32 %v694, 8
      %696 = vset.pattern.permute.xlu0 %v695
      %697 = vperm.xlu0 %696, %v686
      %v698 = vpop.permute.xlu0 %697
      %v699 = vlaneseq
      %v700 = vshrl.u32 %v699, 7
      %v701 = vadd.s32 %v700, 16
      %702 = vset.pattern.permute.xlu0 %v701
      %703 = vperm.xlu0 %702, %v686
      %v704 = vpop.permute.xlu0 %703
      %v705 = vperm.slane %v646, 3
      %v706 = vlaneseq
      %v707 = vshrl.u32 %v706, 7
      %709 = vset.pattern.permute.xlu0 %v707
      %710 = vperm.xlu0 %709, %v705
      %v711 = vpop.permute.xlu0 %710
      %v712 = vlaneseq
      %v713 = vshrl.u32 %v712, 7
      %v714 = vadd.s32 %v713, 8
      %715 = vset.pattern.permute.xlu0 %v714
      %716 = vperm.xlu0 %715, %v705
      %v717 = vpop.permute.xlu0 %716
      %v718 = vlaneseq
      %v719 = vshrl.u32 %v718, 7
      %v720 = vadd.s32 %v719, 16
      %721 = vset.pattern.permute.xlu0 %v720
      %722 = vperm.xlu0 %721, %v705
      %v723 = vpop.permute.xlu0 %722
      %v724 = vperm.slane %v646, 4
      %v725 = vlaneseq
      %v726 = vshrl.u32 %v725, 7
      %728 = vset.pattern.permute.xlu0 %v726
      %729 = vperm.xlu0 %728, %v724
      %v730 = vpop.permute.xlu0 %729
      %v731 = vlaneseq
      %v732 = vshrl.u32 %v731, 7
      %v733 = vadd.s32 %v732, 8
      %734 = vset.pattern.permute.xlu0 %v733
      %735 = vperm.xlu0 %734, %v724
      %v736 = vpop.permute.xlu0 %735
      %v737 = vlaneseq
      %v738 = vshrl.u32 %v737, 7
      %v739 = vadd.s32 %v738, 16
      %740 = vset.pattern.permute.xlu0 %v739
      %741 = vperm.xlu0 %740, %v724
      %v742 = vpop.permute.xlu0 %741
      %v743 = vperm.slane %v646, 5
      %v744 = vlaneseq
      %v745 = vshrl.u32 %v744, 7
      %747 = vset.pattern.permute.xlu0 %v745
      %748 = vperm.xlu0 %747, %v743
      %v749 = vpop.permute.xlu0 %748
      %v750 = vlaneseq
      %v751 = vshrl.u32 %v750, 7
      %v752 = vadd.s32 %v751, 8
      %753 = vset.pattern.permute.xlu0 %v752
      %754 = vperm.xlu0 %753, %v743
      %v755 = vpop.permute.xlu0 %754
      %v756 = vlaneseq
      %v757 = vshrl.u32 %v756, 7
      %v758 = vadd.s32 %v757, 16
      %759 = vset.pattern.permute.xlu0 %v758
      %760 = vperm.xlu0 %759, %v743
      %v761 = vpop.permute.xlu0 %760
      %v762 = vperm.slane %v646, 6
      %v763 = vlaneseq
      %v764 = vshrl.u32 %v763, 7
      %766 = vset.pattern.permute.xlu0 %v764
      %767 = vperm.xlu0 %766, %v762
      %v768 = vpop.permute.xlu0 %767
      %v769 = vlaneseq
      %v770 = vshrl.u32 %v769, 7
      %v771 = vadd.s32 %v770, 8
      %772 = vset.pattern.permute.xlu0 %v771
      %773 = vperm.xlu0 %772, %v762
      %v774 = vpop.permute.xlu0 %773
      %v775 = vlaneseq
      %v776 = vshrl.u32 %v775, 7
      %v777 = vadd.s32 %v776, 16
      %778 = vset.pattern.permute.xlu0 %v777
      %779 = vperm.xlu0 %778, %v762
      %v780 = vpop.permute.xlu0 %779
      %v781 = vperm.slane %v646, 7
      %v782 = vlaneseq
      %v783 = vshrl.u32 %v782, 7
      %785 = vset.pattern.permute.xlu0 %v783
      %786 = vperm.xlu0 %785, %v781
      %v787 = vpop.permute.xlu0 %786
      %v788 = vlaneseq
      %v789 = vshrl.u32 %v788, 7
      %v790 = vadd.s32 %v789, 8
      %791 = vset.pattern.permute.xlu0 %v790
      %792 = vperm.xlu0 %791, %v781
      %v793 = vpop.permute.xlu0 %792
      %v794 = vlaneseq
      %v795 = vshrl.u32 %v794, 7
      %v796 = vadd.s32 %v795, 16
      %797 = vset.pattern.permute.xlu0 %v796
      %798 = vperm.xlu0 %797, %v781
      %v799 = vpop.permute.xlu0 %798
      %v800 = vperm.slane %v647, 0
      %v801 = vlaneseq
      %v802 = vshrl.u32 %v801, 7
      %804 = vset.pattern.permute.xlu0 %v802
      %805 = vperm.xlu0 %804, %v800
      %v806 = vpop.permute.xlu0 %805
      %v807 = vlaneseq
      %v808 = vshrl.u32 %v807, 7
      %v809 = vadd.s32 %v808, 8
      %810 = vset.pattern.permute.xlu0 %v809
      %811 = vperm.xlu0 %810, %v800
      %v812 = vpop.permute.xlu0 %811
      %v813 = vlaneseq
      %v814 = vshrl.u32 %v813, 7
      %v815 = vadd.s32 %v814, 16
      %816 = vset.pattern.permute.xlu0 %v815
      %817 = vperm.xlu0 %816, %v800
      %v818 = vpop.permute.xlu0 %817
      %v819 = vperm.slane %v647, 1
      %v820 = vlaneseq
      %v821 = vshrl.u32 %v820, 7
      %823 = vset.pattern.permute.xlu0 %v821
      %824 = vperm.xlu0 %823, %v819
      %v825 = vpop.permute.xlu0 %824
      %v826 = vlaneseq
      %v827 = vshrl.u32 %v826, 7
      %v828 = vadd.s32 %v827, 8
      %829 = vset.pattern.permute.xlu0 %v828
      %830 = vperm.xlu0 %829, %v819
      %v831 = vpop.permute.xlu0 %830
      %v832 = vlaneseq
      %v833 = vshrl.u32 %v832, 7
      %v834 = vadd.s32 %v833, 16
      %835 = vset.pattern.permute.xlu0 %v834
      %836 = vperm.xlu0 %835, %v819
      %v837 = vpop.permute.xlu0 %836
      %v838 = vmul.f32 %v593, %v654
      %v839 = vmul.f32 %v594, %v660
      %v840 = vmul.f32 %v595, %v666
      %v841 = vmul.f32 %v596, %v673
      %v842 = vmul.f32 %v597, %v679
      %v843 = vmul.f32 %v598, %v685
      %v844 = vmul.f32 %v599, %v692
      %v845 = vmul.f32 %v600, %v698
      %v846 = vmul.f32 %v601, %v704
      %v847 = vmul.f32 %v602, %v711
      %v848 = vmul.f32 %v603, %v717
      %v849 = vmul.f32 %v604, %v723
      %v850 = vmul.f32 %v605, %v730
      %v851 = vmul.f32 %v606, %v736
      %v852 = vmul.f32 %v607, %v742
      %v853 = vmul.f32 %v608, %v749
      %v854 = vmul.f32 %v609, %v755
      %v855 = vmul.f32 %v610, %v761
      %v856 = vmul.f32 %v611, %v768
      %v857 = vmul.f32 %v612, %v774
      %v858 = vmul.f32 %v613, %v780
      %v859 = vmul.f32 %v614, %v787
      %v860 = vmul.f32 %v615, %v793
      %v861 = vmul.f32 %v616, %v799
      %v862 = vmul.f32 %v617, %v806
      %v863 = vmul.f32 %v618, %v812
      %v864 = vmul.f32 %v619, %v818
      %v865 = vmul.f32 %v620, %v825
      %v866 = vmul.f32 %v621, %v831
      %v867 = vmul.f32 %v622, %v837
      %v868 = vld [vmem:[%s3] sm:$0xff]
      %v869 = vld [vmem:[%s3 + $0x8] sm:$0x1]
      %v870 = vld [vmem:[%s4] sm:$0x1]
      %v871 = vld [vmem:[%s5] sm:$0xf]
      %v872 = vld [vmem:[%s5 + $0x4] sm:$0xf]
      %v873 = vld [vmem:[%s5 + $0x8] sm:$0xf]
      %v874 = vld [vmem:[%s5 + $0xc] sm:$0xf]
      %v875 = vld [vmem:[%s5 + $0x10] sm:$0xf]
      %v876 = vld [vmem:[%s5 + $0x14] sm:$0xf]
      %v877 = vld [vmem:[%s5 + $0x18] sm:$0xf]
      %v878 = vld [vmem:[%s5 + $0x1c] sm:$0xf]
      %v879 = vld [vmem:[%s5 + $0x20] sm:$0xf]
      %v880 = vld [vmem:[%s5 + $0x24] sm:$0xf]
      %v881 = vld [vmem:[%s5 + $0x28] sm:$0xf]
      %v882 = vld [vmem:[%s5 + $0x2c] sm:$0xf]
      %v883 = vld [vmem:[%s5 + $0x30] sm:$0xf]
      %v884 = vld [vmem:[%s5 + $0x34] sm:$0xf]
      %v885 = vld [vmem:[%s5 + $0x38] sm:$0xf]
      %v886 = vld [vmem:[%s5 + $0x3c] sm:$0xf]
      %v887 = vld [vmem:[%s6] sm:$0x1]
      %vm888 = vcmp.eq.s32.totalorder %v624, %v631
      %vm889 = vcmp.eq.s32.totalorder %v625, %v631
      %v890 = vsel %vm888, 1, 0
      %v891 = vsel %vm889, 1, 0
      %v892 = vcvt.s32.f32 %v890
      %v893 = vcvt.s32.f32 %v891
      %v894 = vpack.c.bf16 %v893, %v892
      %v895 = vperm.slane %v868, 0
      %v896 = vmul.f32 %v838, %v895
      %v897 = vmul.f32 %v839, %v895
      %v898 = vmul.f32 %v841, %v895
      %v899 = vmul.f32 %v842, %v895
      %v900 = vmul.f32 %v844, %v895
      %v901 = vmul.f32 %v845, %v895
      %v902 = vmul.f32 %v847, %v895
      %v903 = vmul.f32 %v848, %v895
      %v904 = vmul.f32 %v850, %v895
      %v905 = vmul.f32 %v851, %v895
      %v906 = vmul.f32 %v853, %v895
      %v907 = vmul.f32 %v854, %v895
      %v908 = vmul.f32 %v856, %v895
      %v909 = vmul.f32 %v857, %v895
      %v910 = vmul.f32 %v859, %v895
      %v911 = vmul.f32 %v860, %v895
      %v912 = vperm.slane %v868, 1
      %v913 = vmul.f32 %v838, %v912
      %v914 = vmul.f32 %v839, %v912
      %v915 = vmul.f32 %v840, %v912
      %v916 = vmul.f32 %v841, %v912
      %v917 = vmul.f32 %v842, %v912
      %v918 = vmul.f32 %v843, %v912
      %v919 = vmul.f32 %v844, %v912
      %v920 = vmul.f32 %v845, %v912
      %v921 = vmul.f32 %v846, %v912
      %v922 = vmul.f32 %v847, %v912
      %v923 = vmul.f32 %v848, %v912
      %v924 = vmul.f32 %v849, %v912
      %v925 = vmul.f32 %v850, %v912
      %v926 = vmul.f32 %v851, %v912
      %v927 = vmul.f32 %v852, %v912
      %v928 = vmul.f32 %v853, %v912
      %v929 = vmul.f32 %v854, %v912
      %v930 = vmul.f32 %v855, %v912
      %v931 = vmul.f32 %v856, %v912
      %v932 = vmul.f32 %v857, %v912
      %v933 = vmul.f32 %v858, %v912
      %v934 = vmul.f32 %v859, %v912
      %v935 = vmul.f32 %v860, %v912
      %v936 = vmul.f32 %v861, %v912
      %vm961 = vcmask 1046528
      %v962 = vrot.slane %v913, 1
      %v963 = vrot.slane %v914, 1
      %v964 = vsel %vm961, %v962, %v963
      %v965 = vrot.slane %v915, 1
      %v966 = vsel %vm961, %v963, %v965
      %v967 = vrot.slane %v916, 1
      %v968 = vrot.slane %v917, 1
      %v969 = vsel %vm961, %v967, %v968
      %v970 = vrot.slane %v918, 1
      %v971 = vsel %vm961, %v968, %v970
      %v972 = vrot.slane %v919, 1
      %v973 = vrot.slane %v920, 1
      %v974 = vsel %vm961, %v972, %v973
      %v975 = vrot.slane %v921, 1
      %v976 = vsel %vm961, %v973, %v975
      %v977 = vrot.slane %v922, 1
      %v978 = vrot.slane %v923, 1
      %v979 = vsel %vm961, %v977, %v978
      %v980 = vrot.slane %v924, 1
      %v981 = vsel %vm961, %v978, %v980
      %v982 = vrot.slane %v925, 1
      %v983 = vrot.slane %v926, 1
      %v984 = vsel %vm961, %v982, %v983
      %v985 = vrot.slane %v927, 1
      %v986 = vsel %vm961, %v983, %v985
      %v987 = vrot.slane %v928, 1
      %v988 = vrot.slane %v929, 1
      %v989 = vsel %vm961, %v987, %v988
      %v990 = vrot.slane %v930, 1
      %v991 = vsel %vm961, %v988, %v990
      %v992 = vrot.slane %v931, 1
      %v993 = vrot.slane %v932, 1
      %v994 = vsel %vm961, %v992, %v993
      %v995 = vrot.slane %v933, 1
      %v996 = vsel %vm961, %v993, %v995
      %v997 = vrot.slane %v934, 1
      %v998 = vrot.slane %v935, 1
      %v999 = vsel %vm961, %v997, %v998
      %v1000 = vrot.slane %v936, 1
      %v1001 = vsel %vm961, %v998, %v1000
      %v1018 = vadd.f32 %v896, %v964
      %v1019 = vadd.f32 %v897, %v966
      %v1020 = vadd.f32 %v898, %v969
      %v1021 = vadd.f32 %v899, %v971
      %v1022 = vadd.f32 %v900, %v974
      %v1023 = vadd.f32 %v901, %v976
      %v1024 = vadd.f32 %v902, %v979
      %v1025 = vadd.f32 %v903, %v981
      %v1026 = vadd.f32 %v904, %v984
      %v1027 = vadd.f32 %v905, %v986
      %v1028 = vadd.f32 %v906, %v989
      %v1029 = vadd.f32 %v907, %v991
      %v1030 = vadd.f32 %v908, %v994
      %v1031 = vadd.f32 %v909, %v996
      %v1032 = vadd.f32 %v910, %v999
      %v1033 = vadd.f32 %v911, %v1001
      %v1034 = vperm.slane %v868, 2
      %v1035 = vmul.f32 %v838, %v1034
      %v1036 = vmul.f32 %v839, %v1034
      %v1037 = vmul.f32 %v840, %v1034
      %v1038 = vmul.f32 %v841, %v1034
      %v1039 = vmul.f32 %v842, %v1034
      %v1040 = vmul.f32 %v843, %v1034
      %v1041 = vmul.f32 %v844, %v1034
      %v1042 = vmul.f32 %v845, %v1034
      %v1043 = vmul.f32 %v846, %v1034
      %v1044 = vmul.f32 %v847, %v1034
      %v1045 = vmul.f32 %v848, %v1034
      %v1046 = vmul.f32 %v849, %v1034
      %v1047 = vmul.f32 %v850, %v1034
      %v1048 = vmul.f32 %v851, %v1034
      %v1049 = vmul.f32 %v852, %v1034
      %v1050 = vmul.f32 %v853, %v1034
      %v1051 = vmul.f32 %v854, %v1034
      %v1052 = vmul.f32 %v855, %v1034
      %v1053 = vmul.f32 %v856, %v1034
      %v1054 = vmul.f32 %v857, %v1034
      %v1055 = vmul.f32 %v858, %v1034
      %v1056 = vmul.f32 %v859, %v1034
      %v1057 = vmul.f32 %v860, %v1034
      %v1058 = vmul.f32 %v861, %v1034
      %vm1083 = vcmask 1045504
      %v1084 = vrot.slane %v1035, 2
      %v1085 = vrot.slane %v1036, 2
      %v1086 = vsel %vm1083, %v1084, %v1085
      %v1087 = vrot.slane %v1037, 2
      %v1088 = vsel %vm1083, %v1085, %v1087
      %v1089 = vrot.slane %v1038, 2
      %v1090 = vrot.slane %v1039, 2
      %v1091 = vsel %vm1083, %v1089, %v1090
      %v1092 = vrot.slane %v1040, 2
      %v1093 = vsel %vm1083, %v1090, %v1092
      %v1094 = vrot.slane %v1041, 2
      %v1095 = vrot.slane %v1042, 2
      %v1096 = vsel %vm1083, %v1094, %v1095
      %v1097 = vrot.slane %v1043, 2
      %v1098 = vsel %vm1083, %v1095, %v1097
      %v1099 = vrot.slane %v1044, 2
      %v1100 = vrot.slane %v1045, 2
      %v1101 = vsel %vm1083, %v1099, %v1100
      %v1102 = vrot.slane %v1046, 2
      %v1103 = vsel %vm1083, %v1100, %v1102
      %v1104 = vrot.slane %v1047, 2
      %v1105 = vrot.slane %v1048, 2
      %v1106 = vsel %vm1083, %v1104, %v1105
      %v1107 = vrot.slane %v1049, 2
      %v1108 = vsel %vm1083, %v1105, %v1107
      %v1109 = vrot.slane %v1050, 2
      %v1110 = vrot.slane %v1051, 2
      %v1111 = vsel %vm1083, %v1109, %v1110
      %v1112 = vrot.slane %v1052, 2
      %v1113 = vsel %vm1083, %v1110, %v1112
      %v1114 = vrot.slane %v1053, 2
      %v1115 = vrot.slane %v1054, 2
      %v1116 = vsel %vm1083, %v1114, %v1115
      %v1117 = vrot.slane %v1055, 2
      %v1118 = vsel %vm1083, %v1115, %v1117
      %v1119 = vrot.slane %v1056, 2
      %v1120 = vrot.slane %v1057, 2
      %v1121 = vsel %vm1083, %v1119, %v1120
      %v1122 = vrot.slane %v1058, 2
      %v1123 = vsel %vm1083, %v1120, %v1122
      %v1140 = vadd.f32 %v1018, %v1086
      %v1141 = vadd.f32 %v1019, %v1088
      %v1142 = vadd.f32 %v1020, %v1091
      %v1143 = vadd.f32 %v1021, %v1093
      %v1144 = vadd.f32 %v1022, %v1096
      %v1145 = vadd.f32 %v1023, %v1098
      %v1146 = vadd.f32 %v1024, %v1101
      %v1147 = vadd.f32 %v1025, %v1103
      %v1148 = vadd.f32 %v1026, %v1106
      %v1149 = vadd.f32 %v1027, %v1108
      %v1150 = vadd.f32 %v1028, %v1111
      %v1151 = vadd.f32 %v1029, %v1113
      %v1152 = vadd.f32 %v1030, %v1116
      %v1153 = vadd.f32 %v1031, %v1118
      %v1154 = vadd.f32 %v1032, %v1121
      %v1155 = vadd.f32 %v1033, %v1123
      %v1156 = vperm.slane %v868, 3
      %v1157 = vmul.f32 %v841, %v1156
      %v1158 = vmul.f32 %v842, %v1156
      %v1159 = vmul.f32 %v844, %v1156
      %v1160 = vmul.f32 %v845, %v1156
      %v1161 = vmul.f32 %v847, %v1156
      %v1162 = vmul.f32 %v848, %v1156
      %v1163 = vmul.f32 %v850, %v1156
      %v1164 = vmul.f32 %v851, %v1156
      %v1165 = vmul.f32 %v853, %v1156
      %v1166 = vmul.f32 %v854, %v1156
      %v1167 = vmul.f32 %v856, %v1156
      %v1168 = vmul.f32 %v857, %v1156
      %v1169 = vmul.f32 %v859, %v1156
      %v1170 = vmul.f32 %v860, %v1156
      %v1171 = vmul.f32 %v862, %v1156
      %v1172 = vmul.f32 %v863, %v1156
      %v1173 = vadd.f32 %v1140, %v1157
      %v1174 = vadd.f32 %v1141, %v1158
      %v1175 = vadd.f32 %v1142, %v1159
      %v1176 = vadd.f32 %v1143, %v1160
      %v1177 = vadd.f32 %v1144, %v1161
      %v1178 = vadd.f32 %v1145, %v1162
      %v1179 = vadd.f32 %v1146, %v1163
      %v1180 = vadd.f32 %v1147, %v1164
      %v1181 = vadd.f32 %v1148, %v1165
      %v1182 = vadd.f32 %v1149, %v1166
      %v1183 = vadd.f32 %v1150, %v1167
      %v1184 = vadd.f32 %v1151, %v1168
      %v1185 = vadd.f32 %v1152, %v1169
      %v1186 = vadd.f32 %v1153, %v1170
      %v1187 = vadd.f32 %v1154, %v1171
      %v1188 = vadd.f32 %v1155, %v1172
      %v1189 = vperm.slane %v868, 4
      %v1190 = vmul.f32 %v841, %v1189
      %v1191 = vmul.f32 %v842, %v1189
      %v1192 = vmul.f32 %v843, %v1189
      %v1193 = vmul.f32 %v844, %v1189
      %v1194 = vmul.f32 %v845, %v1189
      %v1195 = vmul.f32 %v846, %v1189
      %v1196 = vmul.f32 %v847, %v1189
      %v1197 = vmul.f32 %v848, %v1189
      %v1198 = vmul.f32 %v849, %v1189
      %v1199 = vmul.f32 %v850, %v1189
      %v1200 = vmul.f32 %v851, %v1189
      %v1201 = vmul.f32 %v852, %v1189
      %v1202 = vmul.f32 %v853, %v1189
      %v1203 = vmul.f32 %v854, %v1189
      %v1204 = vmul.f32 %v855, %v1189
      %v1205 = vmul.f32 %v856, %v1189
      %v1206 = vmul.f32 %v857, %v1189
      %v1207 = vmul.f32 %v858, %v1189
      %v1208 = vmul.f32 %v859, %v1189
      %v1209 = vmul.f32 %v860, %v1189
      %v1210 = vmul.f32 %v861, %v1189
      %v1211 = vmul.f32 %v862, %v1189
      %v1212 = vmul.f32 %v863, %v1189
      %v1213 = vmul.f32 %v864, %v1189
      %v1238 = vrot.slane %v1190, 1
      %v1239 = vrot.slane %v1191, 1
      %v1240 = vsel %vm961, %v1238, %v1239
      %v1241 = vrot.slane %v1192, 1
      %v1242 = vsel %vm961, %v1239, %v1241
      %v1243 = vrot.slane %v1193, 1
      %v1244 = vrot.slane %v1194, 1
      %v1245 = vsel %vm961, %v1243, %v1244
      %v1246 = vrot.slane %v1195, 1
      %v1247 = vsel %vm961, %v1244, %v1246
      %v1248 = vrot.slane %v1196, 1
      %v1249 = vrot.slane %v1197, 1
      %v1250 = vsel %vm961, %v1248, %v1249
      %v1251 = vrot.slane %v1198, 1
      %v1252 = vsel %vm961, %v1249, %v1251
      %v1253 = vrot.slane %v1199, 1
      %v1254 = vrot.slane %v1200, 1
      %v1255 = vsel %vm961, %v1253, %v1254
      %v1256 = vrot.slane %v1201, 1
      %v1257 = vsel %vm961, %v1254, %v1256
      %v1258 = vrot.slane %v1202, 1
      %v1259 = vrot.slane %v1203, 1
      %v1260 = vsel %vm961, %v1258, %v1259
      %v1261 = vrot.slane %v1204, 1
      %v1262 = vsel %vm961, %v1259, %v1261
      %v1263 = vrot.slane %v1205, 1
      %v1264 = vrot.slane %v1206, 1
      %v1265 = vsel %vm961, %v1263, %v1264
      %v1266 = vrot.slane %v1207, 1
      %v1267 = vsel %vm961, %v1264, %v1266
      %v1268 = vrot.slane %v1208, 1
      %v1269 = vrot.slane %v1209, 1
      %v1270 = vsel %vm961, %v1268, %v1269
      %v1271 = vrot.slane %v1210, 1
      %v1272 = vsel %vm961, %v1269, %v1271
      %v1273 = vrot.slane %v1211, 1
      %v1274 = vrot.slane %v1212, 1
      %v1275 = vsel %vm961, %v1273, %v1274
      %v1276 = vrot.slane %v1213, 1
      %v1277 = vsel %vm961, %v1274, %v1276
      %v1294 = vadd.f32 %v1173, %v1240
      %v1295 = vadd.f32 %v1174, %v1242
      %v1296 = vadd.f32 %v1175, %v1245
      %v1297 = vadd.f32 %v1176, %v1247
      %v1298 = vadd.f32 %v1177, %v1250
      %v1299 = vadd.f32 %v1178, %v1252
      %v1300 = vadd.f32 %v1179, %v1255
      %v1301 = vadd.f32 %v1180, %v1257
      %v1302 = vadd.f32 %v1181, %v1260
      %v1303 = vadd.f32 %v1182, %v1262
      %v1304 = vadd.f32 %v1183, %v1265
      %v1305 = vadd.f32 %v1184, %v1267
      %v1306 = vadd.f32 %v1185, %v1270
      %v1307 = vadd.f32 %v1186, %v1272
      %v1308 = vadd.f32 %v1187, %v1275
      %v1309 = vadd.f32 %v1188, %v1277
      %v1310 = vperm.slane %v868, 5
      %v1311 = vmul.f32 %v841, %v1310
      %v1312 = vmul.f32 %v842, %v1310
      %v1313 = vmul.f32 %v843, %v1310
      %v1314 = vmul.f32 %v844, %v1310
      %v1315 = vmul.f32 %v845, %v1310
      %v1316 = vmul.f32 %v846, %v1310
      %v1317 = vmul.f32 %v847, %v1310
      %v1318 = vmul.f32 %v848, %v1310
      %v1319 = vmul.f32 %v849, %v1310
      %v1320 = vmul.f32 %v850, %v1310
      %v1321 = vmul.f32 %v851, %v1310
      %v1322 = vmul.f32 %v852, %v1310
      %v1323 = vmul.f32 %v853, %v1310
      %v1324 = vmul.f32 %v854, %v1310
      %v1325 = vmul.f32 %v855, %v1310
      %v1326 = vmul.f32 %v856, %v1310
      %v1327 = vmul.f32 %v857, %v1310
      %v1328 = vmul.f32 %v858, %v1310
      %v1329 = vmul.f32 %v859, %v1310
      %v1330 = vmul.f32 %v860, %v1310
      %v1331 = vmul.f32 %v861, %v1310
      %v1332 = vmul.f32 %v862, %v1310
      %v1333 = vmul.f32 %v863, %v1310
      %v1334 = vmul.f32 %v864, %v1310
      %v1359 = vrot.slane %v1311, 2
      %v1360 = vrot.slane %v1312, 2
      %v1361 = vsel %vm1083, %v1359, %v1360
      %v1362 = vrot.slane %v1313, 2
      %v1363 = vsel %vm1083, %v1360, %v1362
      %v1364 = vrot.slane %v1314, 2
      %v1365 = vrot.slane %v1315, 2
      %v1366 = vsel %vm1083, %v1364, %v1365
      %v1367 = vrot.slane %v1316, 2
      %v1368 = vsel %vm1083, %v1365, %v1367
      %v1369 = vrot.slane %v1317, 2
      %v1370 = vrot.slane %v1318, 2
      %v1371 = vsel %vm1083, %v1369, %v1370
      %v1372 = vrot.slane %v1319, 2
      %v1373 = vsel %vm1083, %v1370, %v1372
      %v1374 = vrot.slane %v1320, 2
      %v1375 = vrot.slane %v1321, 2
      %v1376 = vsel %vm1083, %v1374, %v1375
      %v1377 = vrot.slane %v1322, 2
      %v1378 = vsel %vm1083, %v1375, %v1377
      %v1379 = vrot.slane %v1323, 2
      %v1380 = vrot.slane %v1324, 2
      %v1381 = vsel %vm1083, %v1379, %v1380
      %v1382 = vrot.slane %v1325, 2
      %v1383 = vsel %vm1083, %v1380, %v1382
      %v1384 = vrot.slane %v1326, 2
      %v1385 = vrot.slane %v1327, 2
      %v1386 = vsel %vm1083, %v1384, %v1385
      %v1387 = vrot.slane %v1328, 2
      %v1388 = vsel %vm1083, %v1385, %v1387
      %v1389 = vrot.slane %v1329, 2
      %v1390 = vrot.slane %v1330, 2
      %v1391 = vsel %vm1083, %v1389, %v1390
      %v1392 = vrot.slane %v1331, 2
      %v1393 = vsel %vm1083, %v1390, %v1392
      %v1394 = vrot.slane %v1332, 2
      %v1395 = vrot.slane %v1333, 2
      %v1396 = vsel %vm1083, %v1394, %v1395
      %v1397 = vrot.slane %v1334, 2
      %v1398 = vsel %vm1083, %v1395, %v1397
      %v1415 = vadd.f32 %v1294, %v1361
      %v1416 = vadd.f32 %v1295, %v1363
      %v1417 = vadd.f32 %v1296, %v1366
      %v1418 = vadd.f32 %v1297, %v1368
      %v1419 = vadd.f32 %v1298, %v1371
      %v1420 = vadd.f32 %v1299, %v1373
      %v1421 = vadd.f32 %v1300, %v1376
      %v1422 = vadd.f32 %v1301, %v1378
      %v1423 = vadd.f32 %v1302, %v1381
      %v1424 = vadd.f32 %v1303, %v1383
      %v1425 = vadd.f32 %v1304, %v1386
      %v1426 = vadd.f32 %v1305, %v1388
      %v1427 = vadd.f32 %v1306, %v1391
      %v1428 = vadd.f32 %v1307, %v1393
      %v1429 = vadd.f32 %v1308, %v1396
      %v1430 = vadd.f32 %v1309, %v1398
      %v1431 = vperm.slane %v868, 6
      %v1432 = vmul.f32 %v844, %v1431
      %v1433 = vmul.f32 %v845, %v1431
      %v1434 = vmul.f32 %v847, %v1431
      %v1435 = vmul.f32 %v848, %v1431
      %v1436 = vmul.f32 %v850, %v1431
      %v1437 = vmul.f32 %v851, %v1431
      %v1438 = vmul.f32 %v853, %v1431
      %v1439 = vmul.f32 %v854, %v1431
      %v1440 = vmul.f32 %v856, %v1431
      %v1441 = vmul.f32 %v857, %v1431
      %v1442 = vmul.f32 %v859, %v1431
      %v1443 = vmul.f32 %v860, %v1431
      %v1444 = vmul.f32 %v862, %v1431
      %v1445 = vmul.f32 %v863, %v1431
      %v1446 = vmul.f32 %v865, %v1431
      %v1447 = vmul.f32 %v866, %v1431
      %v1448 = vadd.f32 %v1415, %v1432
      %v1449 = vadd.f32 %v1416, %v1433
      %v1450 = vadd.f32 %v1417, %v1434
      %v1451 = vadd.f32 %v1418, %v1435
      %v1452 = vadd.f32 %v1419, %v1436
      %v1453 = vadd.f32 %v1420, %v1437
      %v1454 = vadd.f32 %v1421, %v1438
      %v1455 = vadd.f32 %v1422, %v1439
      %v1456 = vadd.f32 %v1423, %v1440
      %v1457 = vadd.f32 %v1424, %v1441
      %v1458 = vadd.f32 %v1425, %v1442
      %v1459 = vadd.f32 %v1426, %v1443
      %v1460 = vadd.f32 %v1427, %v1444
      %v1461 = vadd.f32 %v1428, %v1445
      %v1462 = vadd.f32 %v1429, %v1446
      %v1463 = vadd.f32 %v1430, %v1447
      %v1464 = vperm.slane %v868, 7
      %v1465 = vmul.f32 %v844, %v1464
      %v1466 = vmul.f32 %v845, %v1464
      %v1467 = vmul.f32 %v846, %v1464
      %v1468 = vmul.f32 %v847, %v1464
      %v1469 = vmul.f32 %v848, %v1464
      %v1470 = vmul.f32 %v849, %v1464
      %v1471 = vmul.f32 %v850, %v1464
      %v1472 = vmul.f32 %v851, %v1464
      %v1473 = vmul.f32 %v852, %v1464
      %v1474 = vmul.f32 %v853, %v1464
      %v1475 = vmul.f32 %v854, %v1464
      %v1476 = vmul.f32 %v855, %v1464
      %v1477 = vmul.f32 %v856, %v1464
      %v1478 = vmul.f32 %v857, %v1464
      %v1479 = vmul.f32 %v858, %v1464
      %v1480 = vmul.f32 %v859, %v1464
      %v1481 = vmul.f32 %v860, %v1464
      %v1482 = vmul.f32 %v861, %v1464
      %v1483 = vmul.f32 %v862, %v1464
      %v1484 = vmul.f32 %v863, %v1464
      %v1485 = vmul.f32 %v864, %v1464
      %v1486 = vmul.f32 %v865, %v1464
      %v1487 = vmul.f32 %v866, %v1464
      %v1488 = vmul.f32 %v867, %v1464
      %v1513 = vrot.slane %v1465, 1
      %v1514 = vrot.slane %v1466, 1
      %v1515 = vsel %vm961, %v1513, %v1514
      %v1516 = vrot.slane %v1467, 1
      %v1517 = vsel %vm961, %v1514, %v1516
      %v1518 = vrot.slane %v1468, 1
      %v1519 = vrot.slane %v1469, 1
      %v1520 = vsel %vm961, %v1518, %v1519
      %v1521 = vrot.slane %v1470, 1
      %v1522 = vsel %vm961, %v1519, %v1521
      %v1523 = vrot.slane %v1471, 1
      %v1524 = vrot.slane %v1472, 1
      %v1525 = vsel %vm961, %v1523, %v1524
      %v1526 = vrot.slane %v1473, 1
      %v1527 = vsel %vm961, %v1524, %v1526
      %v1528 = vrot.slane %v1474, 1
      %v1529 = vrot.slane %v1475, 1
      %v1530 = vsel %vm961, %v1528, %v1529
      %v1531 = vrot.slane %v1476, 1
      %v1532 = vsel %vm961, %v1529, %v1531
      %v1533 = vrot.slane %v1477, 1
      %v1534 = vrot.slane %v1478, 1
      %v1535 = vsel %vm961, %v1533, %v1534
      %v1536 = vrot.slane %v1479, 1
      %v1537 = vsel %vm961, %v1534, %v1536
      %v1538 = vrot.slane %v1480, 1
      %v1539 = vrot.slane %v1481, 1
      %v1540 = vsel %vm961, %v1538, %v1539
      %v1541 = vrot.slane %v1482, 1
      %v1542 = vsel %vm961, %v1539, %v1541
      %v1543 = vrot.slane %v1483, 1
      %v1544 = vrot.slane %v1484, 1
      %v1545 = vsel %vm961, %v1543, %v1544
      %v1546 = vrot.slane %v1485, 1
      %v1547 = vsel %vm961, %v1544, %v1546
      %v1548 = vrot.slane %v1486, 1
      %v1549 = vrot.slane %v1487, 1
      %v1550 = vsel %vm961, %v1548, %v1549
      %v1551 = vrot.slane %v1488, 1
      %v1552 = vsel %vm961, %v1549, %v1551
      %v1569 = vadd.f32 %v1448, %v1515
      %v1570 = vadd.f32 %v1449, %v1517
      %v1571 = vadd.f32 %v1450, %v1520
      %v1572 = vadd.f32 %v1451, %v1522
      %v1573 = vadd.f32 %v1452, %v1525
      %v1574 = vadd.f32 %v1453, %v1527
      %v1575 = vadd.f32 %v1454, %v1530
      %v1576 = vadd.f32 %v1455, %v1532
      %v1577 = vadd.f32 %v1456, %v1535
      %v1578 = vadd.f32 %v1457, %v1537
      %v1579 = vadd.f32 %v1458, %v1540
      %v1580 = vadd.f32 %v1459, %v1542
      %v1581 = vadd.f32 %v1460, %v1545
      %v1582 = vadd.f32 %v1461, %v1547
      %v1583 = vadd.f32 %v1462, %v1550
      %v1584 = vadd.f32 %v1463, %v1552
      %v1585 = vperm.slane %v869, 0
      %v1586 = vmul.f32 %v844, %v1585
      %v1587 = vmul.f32 %v845, %v1585
      %v1588 = vmul.f32 %v846, %v1585
      %v1589 = vmul.f32 %v847, %v1585
      %v1590 = vmul.f32 %v848, %v1585
      %v1591 = vmul.f32 %v849, %v1585
      %v1592 = vmul.f32 %v850, %v1585
      %v1593 = vmul.f32 %v851, %v1585
      %v1594 = vmul.f32 %v852, %v1585
      %v1595 = vmul.f32 %v853, %v1585
      %v1596 = vmul.f32 %v854, %v1585
      %v1597 = vmul.f32 %v855, %v1585
      %v1598 = vmul.f32 %v856, %v1585
      %v1599 = vmul.f32 %v857, %v1585
      %v1600 = vmul.f32 %v858, %v1585
      %v1601 = vmul.f32 %v859, %v1585
      %v1602 = vmul.f32 %v860, %v1585
      %v1603 = vmul.f32 %v861, %v1585
      %v1604 = vmul.f32 %v862, %v1585
      %v1605 = vmul.f32 %v863, %v1585
      %v1606 = vmul.f32 %v864, %v1585
      %v1607 = vmul.f32 %v865, %v1585
      %v1608 = vmul.f32 %v866, %v1585
      %v1609 = vmul.f32 %v867, %v1585
      %v1634 = vrot.slane %v1586, 2
      %v1635 = vrot.slane %v1587, 2
      %v1636 = vsel %vm1083, %v1634, %v1635
      %v1637 = vrot.slane %v1588, 2
      %v1638 = vsel %vm1083, %v1635, %v1637
      %v1639 = vrot.slane %v1589, 2
      %v1640 = vrot.slane %v1590, 2
      %v1641 = vsel %vm1083, %v1639, %v1640
      %v1642 = vrot.slane %v1591, 2
      %v1643 = vsel %vm1083, %v1640, %v1642
      %v1644 = vrot.slane %v1592, 2
      %v1645 = vrot.slane %v1593, 2
      %v1646 = vsel %vm1083, %v1644, %v1645
      %v1647 = vrot.slane %v1594, 2
      %v1648 = vsel %vm1083, %v1645, %v1647
      %v1649 = vrot.slane %v1595, 2
      %v1650 = vrot.slane %v1596, 2
      %v1651 = vsel %vm1083, %v1649, %v1650
      %v1652 = vrot.slane %v1597, 2
      %v1653 = vsel %vm1083, %v1650, %v1652
      %v1654 = vrot.slane %v1598, 2
      %v1655 = vrot.slane %v1599, 2
      %v1656 = vsel %vm1083, %v1654, %v1655
      %v1657 = vrot.slane %v1600, 2
      %v1658 = vsel %vm1083, %v1655, %v1657
      %v1659 = vrot.slane %v1601, 2
      %v1660 = vrot.slane %v1602, 2
      %v1661 = vsel %vm1083, %v1659, %v1660
      %v1662 = vrot.slane %v1603, 2
      %v1663 = vsel %vm1083, %v1660, %v1662
      %v1664 = vrot.slane %v1604, 2
      %v1665 = vrot.slane %v1605, 2
      %v1666 = vsel %vm1083, %v1664, %v1665
      %v1667 = vrot.slane %v1606, 2
      %v1668 = vsel %vm1083, %v1665, %v1667
      %v1669 = vrot.slane %v1607, 2
      %v1670 = vrot.slane %v1608, 2
      %v1671 = vsel %vm1083, %v1669, %v1670
      %v1672 = vrot.slane %v1609, 2
      %v1673 = vsel %vm1083, %v1670, %v1672
      %v1690 = vadd.f32 %v1569, %v1636
      %v1691 = vadd.f32 %v1570, %v1638
      %v1692 = vadd.f32 %v1571, %v1641
      %v1693 = vadd.f32 %v1572, %v1643
      %v1694 = vadd.f32 %v1573, %v1646
      %v1695 = vadd.f32 %v1574, %v1648
      %v1696 = vadd.f32 %v1575, %v1651
      %v1697 = vadd.f32 %v1576, %v1653
      %v1698 = vadd.f32 %v1577, %v1656
      %v1699 = vadd.f32 %v1578, %v1658
      %v1700 = vadd.f32 %v1579, %v1661
      %v1701 = vadd.f32 %v1580, %v1663
      %v1702 = vadd.f32 %v1581, %v1666
      %v1703 = vadd.f32 %v1582, %v1668
      %v1704 = vadd.f32 %v1583, %v1671
      %v1705 = vadd.f32 %v1584, %v1673
      %v1707 = vperm.slane %v870, 0
      %v1709 = vadd.f32 %v1690, %v1707
      %v1710 = vadd.f32 %v1691, %v1707
      %v1711 = vadd.f32 %v1692, %v1707
      %v1712 = vadd.f32 %v1693, %v1707
      %v1713 = vadd.f32 %v1694, %v1707
      %v1714 = vadd.f32 %v1695, %v1707
      %v1715 = vadd.f32 %v1696, %v1707
      %v1716 = vadd.f32 %v1697, %v1707
      %v1717 = vadd.f32 %v1698, %v1707
      %v1718 = vadd.f32 %v1699, %v1707
      %v1719 = vadd.f32 %v1700, %v1707
      %v1720 = vadd.f32 %v1701, %v1707
      %v1721 = vadd.f32 %v1702, %v1707
      %v1722 = vadd.f32 %v1703, %v1707
      %v1723 = vadd.f32 %v1704, %v1707
      %v1724 = vadd.f32 %v1705, %v1707
      %v1725 = vmax.f32 %v1709, 0.0
      %v1726 = vmax.f32 %v1710, 0.0
      %v1727 = vmax.f32 %v1711, 0.0
      %v1728 = vmax.f32 %v1712, 0.0
      %v1729 = vmax.f32 %v1713, 0.0
      %v1730 = vmax.f32 %v1714, 0.0
      %v1731 = vmax.f32 %v1715, 0.0
      %v1732 = vmax.f32 %v1716, 0.0
      %v1733 = vmax.f32 %v1717, 0.0
      %v1734 = vmax.f32 %v1718, 0.0
      %v1735 = vmax.f32 %v1719, 0.0
      %v1736 = vmax.f32 %v1720, 0.0
      %v1737 = vmax.f32 %v1721, 0.0
      %v1738 = vmax.f32 %v1722, 0.0
      %v1739 = vmax.f32 %v1723, 0.0
      %v1740 = vmax.f32 %v1724, 0.0
      %v1741 = vmin.f32 %v1725, 6.0
      %v1742 = vmin.f32 %v1726, 6.0
      %v1743 = vmin.f32 %v1727, 6.0
      %v1744 = vmin.f32 %v1728, 6.0
      %v1745 = vmin.f32 %v1729, 6.0
      %v1746 = vmin.f32 %v1730, 6.0
      %v1747 = vmin.f32 %v1731, 6.0
      %v1748 = vmin.f32 %v1732, 6.0
      %v1749 = vmin.f32 %v1733, 6.0
      %v1750 = vmin.f32 %v1734, 6.0
      %v1751 = vmin.f32 %v1735, 6.0
      %v1752 = vmin.f32 %v1736, 6.0
      %v1753 = vmin.f32 %v1737, 6.0
      %v1754 = vmin.f32 %v1738, 6.0
      %v1755 = vmin.f32 %v1739, 6.0
      %v1756 = vmin.f32 %v1740, 6.0
      %v1757 = vpack.c.bf16 %v1742, %v1741
      %v1758 = vpack.c.bf16 %v1744, %v1743
      %v1759 = vpack.c.bf16 %v1746, %v1745
      %v1760 = vpack.c.bf16 %v1748, %v1747
      %v1761 = vpack.c.bf16 %v1750, %v1749
      %v1762 = vpack.c.bf16 %v1752, %v1751
      %v1763 = vpack.c.bf16 %v1754, %v1753
      %v1764 = vpack.c.bf16 %v1756, %v1755
      %v1766 = vperm.slane %v887, 0
      %v1784 = vunpack.c.l.b16 %v871
      %v1785 = vunpack.c.l.b16 %v872
      %v1786 = vunpack.c.l.b16 %v873
      %v1787 = vunpack.c.l.b16 %v874
      %v1788 = vunpack.c.l.b16 %v875
      %v1789 = vunpack.c.l.b16 %v876
      %v1790 = vunpack.c.l.b16 %v877
      %v1791 = vunpack.c.l.b16 %v878
      %v1792 = vunpack.c.l.b16 %v879
      %v1793 = vunpack.c.l.b16 %v880
      %v1794 = vunpack.c.l.b16 %v881
      %v1795 = vunpack.c.l.b16 %v882
      %v1796 = vunpack.c.l.b16 %v883
      %v1797 = vunpack.c.l.b16 %v884
      %v1798 = vunpack.c.l.b16 %v885
      %v1799 = vunpack.c.l.b16 %v886
      %v1800 = vpack.c.b16 %v1785, %v1784
      %v1801 = vpack.c.b16 %v1787, %v1786
      %v1802 = vpack.c.b16 %v1789, %v1788
      %v1803 = vpack.c.b16 %v1791, %v1790
      %v1804 = vpack.c.b16 %v1793, %v1792
      %v1805 = vpack.c.b16 %v1795, %v1794
      %v1806 = vpack.c.b16 %v1797, %v1796
      %v1807 = vpack.c.b16 %v1799, %v1798
      %1816 = vmatpush.bf16.msra.mxu0 %v1807
      %1817 = vmatpush.bf16.msra.mxu0 %v1806
      %1818 = vmatpush.bf16.msra.mxu0 %v1805
      %1819 = vmatpush.bf16.msra.mxu0 %v1804
      %1820 = vmatpush.bf16.msra.mxu0 %v1803
      %1821 = vmatpush.bf16.msra.mxu0 %v1802
      %1822 = vmatpush.bf16.msra.mxu0 %v1801
      %1823 = vmatpush.bf16.msra.mxu0 %v1800
      %1824 = vmatmul.bf16.gmra.mxu0 %v1757
      %v1825 = vpop.f32.mrf.mxu0
      %v1826 = vadd.f32 %v1766, %v1825
      %v1827 = vpop.f32.mrf.mxu0
      %v1828 = vadd.f32 %v1766, %v1827
      %1829 = vmatmul.bf16.gmra.mxu0 %v1758
      %v1830 = vpop.f32.mrf.mxu0
      %v1831 = vadd.f32 %v1766, %v1830
      %v1832 = vpop.f32.mrf.mxu0
      %v1833 = vadd.f32 %v1766, %v1832
      %1834 = vmatmul.bf16.gmra.mxu0 %v1759
      %v1835 = vpop.f32.mrf.mxu0
      %v1836 = vadd.f32 %v1766, %v1835
      %v1837 = vpop.f32.mrf.mxu0
      %v1838 = vadd.f32 %v1766, %v1837
      %1839 = vmatmul.bf16.gmra.mxu0 %v1760
      %v1840 = vpop.f32.mrf.mxu0
      %v1841 = vadd.f32 %v1766, %v1840
      %v1842 = vpop.f32.mrf.mxu0
      %v1843 = vadd.f32 %v1766, %v1842
      %1844 = vmatmul.bf16.gmra.mxu0 %v1761
      %v1845 = vpop.f32.mrf.mxu0
      %v1846 = vadd.f32 %v1766, %v1845
      %v1847 = vpop.f32.mrf.mxu0
      %v1848 = vadd.f32 %v1766, %v1847
      %1849 = vmatmul.bf16.gmra.mxu0 %v1762
      %v1850 = vpop.f32.mrf.mxu0
      %v1851 = vadd.f32 %v1766, %v1850
      %v1852 = vpop.f32.mrf.mxu0
      %v1853 = vadd.f32 %v1766, %v1852
      %1854 = vmatmul.bf16.gmra.mxu0 %v1763
      %v1855 = vpop.f32.mrf.mxu0
      %v1856 = vadd.f32 %v1766, %v1855
      %v1857 = vpop.f32.mrf.mxu0
      %v1858 = vadd.f32 %v1766, %v1857
      %1859 = vmatmul.bf16.gmra.mxu0 %v1764
      %v1860 = vpop.f32.mrf.mxu0
      %v1861 = vadd.f32 %v1766, %v1860
      %v1862 = vpop.f32.mrf.mxu0
      %v1863 = vadd.f32 %v1766, %v1862
      %1864 = vdwg.mxu0
      %vm1865 = vsmask.f32 3328
      %vm1866 = vsmask.f32 7440
      %vm1867 = vmor %vm1865, %vm1866
      %v1869 = vshrl.u32 %v319, 16
      %v1871 = vrot.slane %v1869, 4
      %v1872 = vshll.u32 %v319, 16
      %v1874 = vrot.slane %v1872, 5
      %v1875 = vor.u32 %v1871, %v1874
      %v1876 = vrot.slane %v1875, 4
      %v1878 = vshll.u32 %v320, 16
      %v1880 = vrot.slane %v1878, 5
      %v1881 = vsel %vm1867, %v1876, %v1880
      %v1882 = vshrl.u32 %v320, 16
      %v1884 = vrot.slane %v1882, 4
      %v1885 = vor.u32 %v1884, %v1880
      %v1886 = vrot.slane %v1885, 4
      %v1888 = vshll.u32 %v321, 16
      %v1890 = vrot.slane %v1888, 5
      %v1891 = vsel %vm1867, %v1886, %v1890
      %v1893 = vshrl.u32 %v322, 16
      %v1895 = vrot.slane %v1893, 4
      %v1896 = vshll.u32 %v322, 16
      %v1898 = vrot.slane %v1896, 5
      %v1899 = vor.u32 %v1895, %v1898
      %v1900 = vrot.slane %v1899, 4
      %v1902 = vshll.u32 %v323, 16
      %v1904 = vrot.slane %v1902, 5
      %v1905 = vsel %vm1867, %v1900, %v1904
      %v1906 = vshrl.u32 %v323, 16
      %v1908 = vrot.slane %v1906, 4
      %v1909 = vor.u32 %v1908, %v1904
      %v1910 = vrot.slane %v1909, 4
      %v1912 = vshll.u32 %v324, 16
      %v1914 = vrot.slane %v1912, 5
      %v1915 = vsel %vm1867, %v1910, %v1914
      %v1917 = vshrl.u32 %v325, 16
      %v1919 = vrot.slane %v1917, 4
      %v1920 = vshll.u32 %v325, 16
      %v1922 = vrot.slane %v1920, 5
      %v1923 = vor.u32 %v1919, %v1922
      %v1924 = vrot.slane %v1923, 4
      %v1926 = vshll.u32 %v326, 16
      %v1928 = vrot.slane %v1926, 5
      %v1929 = vsel %vm1867, %v1924, %v1928
      %v1930 = vshrl.u32 %v326, 16
      %v1932 = vrot.slane %v1930, 4
      %v1933 = vor.u32 %v1932, %v1928
      %v1934 = vrot.slane %v1933, 4
      %v1936 = vshll.u32 %v327, 16
      %v1938 = vrot.slane %v1936, 5
      %v1939 = vsel %vm1867, %v1934, %v1938
      %v1941 = vshrl.u32 %v328, 16
      %v1943 = vrot.slane %v1941, 4
      %v1944 = vshll.u32 %v328, 16
      %v1946 = vrot.slane %v1944, 5
      %v1947 = vor.u32 %v1943, %v1946
      %v1948 = vrot.slane %v1947, 4
      %v1950 = vshll.u32 %v329, 16
      %v1952 = vrot.slane %v1950, 5
      %v1953 = vsel %vm1867, %v1948, %v1952
      %v1954 = vshrl.u32 %v329, 16
      %v1956 = vrot.slane %v1954, 4
      %v1957 = vor.u32 %v1956, %v1952
      %v1958 = vrot.slane %v1957, 4
      %v1960 = vshll.u32 %v330, 16
      %v1962 = vrot.slane %v1960, 5
      %v1963 = vsel %vm1867, %v1958, %v1962
      %v1965 = vshrl.u32 %v331, 16
      %v1967 = vrot.slane %v1965, 4
      %v1968 = vshll.u32 %v331, 16
      %v1970 = vrot.slane %v1968, 5
      %v1971 = vor.u32 %v1967, %v1970
      %v1972 = vrot.slane %v1971, 4
      %v1974 = vshll.u32 %v332, 16
      %v1976 = vrot.slane %v1974, 5
      %v1977 = vsel %vm1867, %v1972, %v1976
      %v1978 = vshrl.u32 %v332, 16
      %v1980 = vrot.slane %v1978, 4
      %v1981 = vor.u32 %v1980, %v1976
      %v1982 = vrot.slane %v1981, 4
      %v1984 = vshll.u32 %v333, 16
      %v1986 = vrot.slane %v1984, 5
      %v1987 = vsel %vm1867, %v1982, %v1986
      %v1989 = vshrl.u32 %v334, 16
      %v1991 = vrot.slane %v1989, 4
      %v1992 = vshll.u32 %v334, 16
      %v1994 = vrot.slane %v1992, 5
      %v1995 = vor.u32 %v1991, %v1994
      %v1996 = vrot.slane %v1995, 4
      %v1998 = vshll.u32 %v335, 16
      %v2000 = vrot.slane %v1998, 5
      %v2001 = vsel %vm1867, %v1996, %v2000
      %v2002 = vshrl.u32 %v335, 16
      %v2004 = vrot.slane %v2002, 4
      %v2005 = vor.u32 %v2004, %v2000
      %v2006 = vrot.slane %v2005, 4
      %v2008 = vshll.u32 %v336, 16
      %v2010 = vrot.slane %v2008, 5
      %v2011 = vsel %vm1867, %v2006, %v2010
      %v2013 = vshrl.u32 %v337, 16
      %v2015 = vrot.slane %v2013, 4
      %v2016 = vshll.u32 %v337, 16
      %v2018 = vrot.slane %v2016, 5
      %v2019 = vor.u32 %v2015, %v2018
      %v2020 = vrot.slane %v2019, 4
      %v2022 = vshll.u32 %v338, 16
      %v2024 = vrot.slane %v2022, 5
      %v2025 = vsel %vm1867, %v2020, %v2024
      %v2026 = vshrl.u32 %v338, 16
      %v2028 = vrot.slane %v2026, 4
      %v2029 = vor.u32 %v2028, %v2024
      %v2030 = vrot.slane %v2029, 4
      %v2032 = vshll.u32 %v339, 16
      %v2034 = vrot.slane %v2032, 5
      %v2035 = vsel %vm1867, %v2030, %v2034
      %v2037 = vshrl.u32 %v340, 16
      %v2039 = vrot.slane %v2037, 4
      %v2040 = vshll.u32 %v340, 16
      %v2042 = vrot.slane %v2040, 5
      %v2043 = vor.u32 %v2039, %v2042
      %v2044 = vrot.slane %v2043, 4
      %v2046 = vshll.u32 %v341, 16
      %v2048 = vrot.slane %v2046, 5
      %v2049 = vsel %vm1867, %v2044, %v2048
      %v2050 = vshrl.u32 %v341, 16
      %v2052 = vrot.slane %v2050, 4
      %v2053 = vor.u32 %v2052, %v2048
      %v2054 = vrot.slane %v2053, 4
      %v2056 = vshll.u32 %v342, 16
      %v2058 = vrot.slane %v2056, 5
      %v2059 = vsel %vm1867, %v2054, %v2058
      %v2060 = vunpack.c.l.b16 %v1881
      %v2061 = vunpack.c.l.b16 %v1891
      %v2062 = vunpack.c.l.b16 %v1905
      %v2063 = vunpack.c.l.b16 %v1915
      %v2064 = vunpack.c.l.b16 %v1929
      %v2065 = vunpack.c.l.b16 %v1939
      %v2066 = vunpack.c.l.b16 %v1953
      %v2067 = vunpack.c.l.b16 %v1963
      %v2068 = vunpack.c.l.b16 %v1977
      %v2069 = vunpack.c.l.b16 %v1987
      %v2070 = vunpack.c.l.b16 %v2001
      %v2071 = vunpack.c.l.b16 %v2011
      %v2072 = vunpack.c.l.b16 %v2025
      %v2073 = vunpack.c.l.b16 %v2035
      %v2074 = vunpack.c.l.b16 %v2049
      %v2075 = vunpack.c.l.b16 %v2059
      %v2076 = vpack.c.b16 %v2061, %v2060
      %v2077 = vpack.c.b16 %v2063, %v2062
      %v2078 = vpack.c.b16 %v2065, %v2064
      %v2079 = vpack.c.b16 %v2067, %v2066
      %v2080 = vpack.c.b16 %v2069, %v2068
      %v2081 = vpack.c.b16 %v2071, %v2070
      %v2082 = vpack.c.b16 %v2073, %v2072
      %v2083 = vpack.c.b16 %v2075, %v2074
      %v2085 = vsel %vm433, %v2076, 0
      %v2088 = vsel %vm433, %v2077, 0
      %v2091 = vsel %vm433, %v2078, 0
      %v2094 = vsel %vm433, %v2079, 0
      %v2097 = vsel %vm433, %v2080, 0
      %v2100 = vsel %vm433, %v2081, 0
      %v2103 = vsel %vm433, %v2082, 0
      %v2106 = vsel %vm433, %v2083, 0
      %2108 = vmatpush.bf16.msra.mxu0 0
      %2109 = vmatpush.bf16.msra.mxu0 0
      %2110 = vmatpush.bf16.msra.mxu0 0
      %2111 = vmatpush.bf16.msra.mxu0 0
      %2112 = vmatpush.bf16.msra.mxu0 0
      %2113 = vmatpush.bf16.msra.mxu0 0
      %2114 = vmatpush.bf16.msra.mxu0 0
      %2115 = vmatpush.bf16.msra.mxu0 %v894
      %2116 = vmatmul.bf16.gmra.mxu0 %v2085
      %v2117 = vpop.f32.mrf.mxu0
      %v2118 = vadd.f32 0.0, %v2117
      %v2119 = vpop.f32.mrf.mxu0
      %v2120 = vadd.f32 0.0, %v2119
      %2121 = vmatmul.bf16.gmra.mxu0 %v2088
      %v2122 = vpop.f32.mrf.mxu0
      %v2123 = vadd.f32 0.0, %v2122
      %v2124 = vpop.f32.mrf.mxu0
      %v2125 = vadd.f32 0.0, %v2124
      %2126 = vmatmul.bf16.gmra.mxu0 %v2091
      %v2127 = vpop.f32.mrf.mxu0
      %v2128 = vadd.f32 0.0, %v2127
      %v2129 = vpop.f32.mrf.mxu0
      %v2130 = vadd.f32 0.0, %v2129
      %2131 = vmatmul.bf16.gmra.mxu0 %v2094
      %v2132 = vpop.f32.mrf.mxu0
      %v2133 = vadd.f32 0.0, %v2132
      %v2134 = vpop.f32.mrf.mxu0
      %v2135 = vadd.f32 0.0, %v2134
      %2136 = vmatmul.bf16.gmra.mxu0 %v2097
      %v2137 = vpop.f32.mrf.mxu0
      %v2138 = vadd.f32 0.0, %v2137
      %v2139 = vpop.f32.mrf.mxu0
      %v2140 = vadd.f32 0.0, %v2139
      %2141 = vmatmul.bf16.gmra.mxu0 %v2100
      %v2142 = vpop.f32.mrf.mxu0
      %v2143 = vadd.f32 0.0, %v2142
      %v2144 = vpop.f32.mrf.mxu0
      %v2145 = vadd.f32 0.0, %v2144
      %2146 = vmatmul.bf16.gmra.mxu0 %v2103
      %v2147 = vpop.f32.mrf.mxu0
      %v2148 = vadd.f32 0.0, %v2147
      %v2149 = vpop.f32.mrf.mxu0
      %v2150 = vadd.f32 0.0, %v2149
      %2151 = vmatmul.bf16.gmra.mxu0 %v2106
      %v2152 = vpop.f32.mrf.mxu0
      %v2153 = vadd.f32 0.0, %v2152
      %v2154 = vpop.f32.mrf.mxu0
      %v2155 = vadd.f32 0.0, %v2154
      %2156 = vdwg.mxu0
      %v2157 = vadd.f32 %v1826, %v2118
      %v2158 = vadd.f32 %v1828, %v2120
      %v2159 = vadd.f32 %v1831, %v2123
      %v2160 = vadd.f32 %v1833, %v2125
      %v2161 = vadd.f32 %v1836, %v2128
      %v2162 = vadd.f32 %v1838, %v2130
      %v2163 = vadd.f32 %v1841, %v2133
      %v2164 = vadd.f32 %v1843, %v2135
      %v2165 = vadd.f32 %v1846, %v2138
      %v2166 = vadd.f32 %v1848, %v2140
      %v2167 = vadd.f32 %v1851, %v2143
      %v2168 = vadd.f32 %v1853, %v2145
      %v2169 = vadd.f32 %v1856, %v2148
      %v2170 = vadd.f32 %v1858, %v2150
      %v2171 = vadd.f32 %v1861, %v2153
      %v2172 = vadd.f32 %v1863, %v2155
      %v2173 = vpack.c.bf16 %v2157, %v2157
      %v2174 = vpack.c.bf16 %v2158, %v2158
      %v2175 = vpack.c.bf16 %v2159, %v2159
      %v2176 = vpack.c.bf16 %v2160, %v2160
      %v2177 = vpack.c.bf16 %v2161, %v2161
      %v2178 = vpack.c.bf16 %v2162, %v2162
      %v2179 = vpack.c.bf16 %v2163, %v2163
      %v2180 = vpack.c.bf16 %v2164, %v2164
      %v2181 = vpack.c.bf16 %v2165, %v2165
      %v2182 = vpack.c.bf16 %v2166, %v2166
      %v2183 = vpack.c.bf16 %v2167, %v2167
      %v2184 = vpack.c.bf16 %v2168, %v2168
      %v2185 = vpack.c.bf16 %v2169, %v2169
      %v2186 = vpack.c.bf16 %v2170, %v2170
      %v2187 = vpack.c.bf16 %v2171, %v2171
      %v2188 = vpack.c.bf16 %v2172, %v2172
      %2189 = vst [vmem:[%s314] sm:$0xf] %v2173
      %2190 = vst [vmem:[%s314 + $0x4] sm:$0xf] %v2174
      %2191 = vst [vmem:[%s314 + $0x8] sm:$0xf] %v2175
      %2192 = vst [vmem:[%s314 + $0xc] sm:$0xf] %v2176
      %2193 = vst [vmem:[%s314 + $0x10] sm:$0xf] %v2177
      %2194 = vst [vmem:[%s314 + $0x14] sm:$0xf] %v2178
      %2195 = vst [vmem:[%s314 + $0x18] sm:$0xf] %v2179
      %2196 = vst [vmem:[%s314 + $0x1c] sm:$0xf] %v2180
      %2197 = vst [vmem:[%s314 + $0x20] sm:$0xf] %v2181
      %2198 = vst [vmem:[%s314 + $0x24] sm:$0xf] %v2182
      %2199 = vst [vmem:[%s314 + $0x28] sm:$0xf] %v2183
      %2200 = vst [vmem:[%s314 + $0x2c] sm:$0xf] %v2184
      %2201 = vst [vmem:[%s314 + $0x30] sm:$0xf] %v2185
      %2202 = vst [vmem:[%s314 + $0x34] sm:$0xf] %v2186
      %2203 = vst [vmem:[%s314 + $0x38] sm:$0xf] %v2187
      %2204 = vst [vmem:[%s314 + $0x3c] sm:$0xf] %v2188
      %p2205 = scmp.lt.s32.totalorder %s22, 1
      %s2206 = scalar_select %p2205, %s22, 1
      %p2207 = scmp.lt.s32.totalorder %s23, 1
      %s2208 = scalar_select %p2207, %s23, 1
      %s2209 = smul.addr %s2208, 16
      %s2210 = smul.addr %s2206, 32
      %s2211 = sadd.s32 %s2209, %s2210
      %s2212 = smul.addr %s2211, 4
      %s2213 = scalar_lea.vmem %s7, %s2212
      // Predicated region
      $region49: #{inverted_residual_forward.1} parent=47 // pred_check
        %p2214 = pneg %p204
      $region50: #{inverted_residual_forward.1} parent=47 // pred_check_branch
        %2216 = sbr.rel (%p2214) target = $region52
      $region51: #{inverted_residual_forward.1} parent=47 // pred_region
        _
      $region52: #{inverted_residual_forward.1} parent=47 // pred_fallthru
        _
    $region48: #{inverted_residual_forward.1} parent=5 // pred_fallthru
      _
    %p2217 = scmp.le.s32.totalorder 2, %s13
    // Predicated region
    $region53: #{inverted_residual_forward.1} parent=5 // pred_check
      %p2218 = pneg %p2217
    $region54: #{inverted_residual_forward.1} parent=5 // pred_check_branch
      %2220 = sbr.rel (%p2218) target = $region56
    $region55: #{inverted_residual_forward.1} parent=5 // pred_region
      %s2221 = ssub.s32 %s13, 2
      // Predicated region
      $region57: #{inverted_residual_forward.1} parent=55 // pred_check
        %p2222 = pneg %p210
      $region58: #{inverted_residual_forward.1} parent=55 // pred_check_branch
        %2224 = sbr.rel (%p2222) target = $region60
      $region59: #{inverted_residual_forward.1} parent=55 // pred_region
        %p2225 = scmp.lt.s32.totalorder %s24, 1
        %s2226 = scalar_select %p2225, %s24, 1
        %p2227 = scmp.lt.s32.totalorder %s25, 1
        %s2228 = scalar_select %p2227, %s25, 1
        %s2229 = smul.addr %s2228, 16
        %s2230 = smul.addr %s2226, 32
        %s2231 = sadd.s32 %s2229, %s2230
        %s2232 = smul.addr %s2231, 4
        %s2233 = scalar_lea.vmem %s7, %s2232
      $region60: #{inverted_residual_forward.1} parent=55 // pred_fallthru
        _
    $region56: #{inverted_residual_forward.1} parent=5 // pred_fallthru
      _
  $region6: #{inverted_residual_forward.1} parent=0 // loop_footer
    %s17 = sadd.s32 1, %s13
  $region7: #{inverted_residual_forward.1} parent=0 // loop_footer_branch
    %12 = sbr.rel target = $region3
  $region8: #{inverted_residual_forward.1} parent=0 // loop_exit
    _

</llo_original>
